<compile_context>
chip_gen: v5e
topology: v5e:2x2
jax: 0.10.0
libtpu: 0.0.40
codegen_flags: <defaults>
</compile_context>

<pallas_src>
import jax
import jax.numpy as jnp
from jax import lax
from jax.experimental import pallas as pl
from jax.experimental.pallas import tpu as pltpu

EPS = 1e-5  # PyTorch BatchNorm2d default eps


def _round_up(x, m):
    return ((x + m - 1) // m) * m


def _pick_fold(n, ppad, lane_budget=1024):
    """Images folded onto the lane axis per grid step: largest divisor of n whose
    folded lane width fits the budget (keeps per-step VMEM tiny and, for larger n,
    leaves >= 2 grid steps so v7x megacore can split the grid)."""
    b = 1
    for cand in range(1, n + 1):
        if n % cand == 0 and cand * ppad <= lane_budget:
            b = cand
    return b


# ---------------------------------------------------------------------------
# Kernel factory (closes over static shapes)
# ---------------------------------------------------------------------------
def _make_kernel(H, W, CPAD, LANES):
    row = W + 2  # lane stride of one padded image row

    def kernel(x_ref, mask_ref, bn1_ref, w1_ref, bn2_ref, w2_ref,
               bn3_ref, w3_ref, b3_ref, out_ref):
        x = x_ref[0]                # (CPAD, LANES): zero-padded input, B images on lanes
        mask = mask_ref[...]        # (1, LANES): 1.0 on interior pixels, 0.0 on halo/pad lanes

        def bn_act(z, bn_ref):
            # folded inference BatchNorm (+ previous conv bias) then ReLU
            return jnp.maximum(z * bn_ref[:, 0:1] + bn_ref[:, 1:2], 0.0)

        def shift(a, off):
            # a[:, p + off] via a cyclic lane rotation (XLU slot, no stores).
            # Any wrap across an image boundary lands on zeroed halo/pad lanes, so
            # the 'same' conv padding is exact for every interior output pixel.
            if off == 0:
                return a
            return pltpu.roll(a, shift=(-off) % LANES, axis=1)

        def conv3x3(a, w_ref):
            # w_ref: (3, CPAD, 3*CPAD); group g = kernel row dh, K ordered (dw, cin).
            am = a * mask
            out = None
            for g, dh in enumerate((-1, 0, 1)):
                pat = jnp.concatenate(
                    [shift(am, dh * row + dw) for dw in (-1, 0, 1)], axis=0)  # (3*CPAD, LANES)
                part = jnp.dot(w_ref[g], pat, preferred_element_type=jnp.float32)
                out = part if out is None else out + part
            return out                                                        # (CPAD, LANES)

        a1 = bn_act(x, bn1_ref)                                   # BN1 + ReLU
        y1 = jnp.dot(w1_ref[...], a1,
                     preferred_element_type=jnp.float32)          # 1x1 conv (bias folded into BN2)
        a2 = bn_act(y1, bn2_ref)                                  # BN2 + ReLU
        y2 = conv3x3(a2, w2_ref)                                  # 3x3 conv (bias folded into BN3)
        a3 = bn_act(y2, bn3_ref)                                  # BN3 + ReLU
        y3 = conv3x3(a3, w3_ref) + b3_ref[...]                    # 3x3 conv + bias
        out_ref[0] = y3 + x                                       # residual with raw input

    return kernel


# ---------------------------------------------------------------------------
# Wrapper: host-side folding / packing / padding + pallas_call
# ---------------------------------------------------------------------------
def pre_identity_block(x_nchw, p):
    N, C, H, W = x_nchw.shape
    F1 = p["w1"].shape[1]
    F2 = p["w2"].shape[3]
    F3 = p["w3"].shape[3]
    assert F3 == C, "residual add requires filter3 == in_c"
    f32 = jnp.float32

    CPAD = max(8, _round_up(max(C, F1, F2), 8))   # one padded channel width for all stages
    Pimg = (H + 2) * (W + 2)                      # pixels per zero-padded image
    PPAD = _round_up(Pimg, 128)                   # lane-dense per-image width
    B = _pick_fold(N, PPAD)                       # images per grid step (on the lane axis)
    G = N // B
    LANES = B * PPAD

    kernel = _make_kernel(H, W, CPAD, LANES)

    # ---- fold BatchNorm (+ preceding conv bias) into per-channel scale/shift ----
    def fold(bn, prev_bias=None):
        gamma, beta, mu, var = bn[0], bn[1], bn[2], bn[3]
        s = gamma * lax.rsqrt(var + EPS)
        t = beta - mu * s
        if prev_bias is not None:
            t = t + s * prev_bias
        return s, t

    def pack_bn(s, t, c):
        out = jnp.zeros((CPAD, 2), f32)
        return out.at[:c, 0].set(s).at[:c, 1].set(t)

    s1, t1 = fold(p["bn1"])
    s2, t2 = fold(p["bn2"], p["b1"][0])
    s3, t3 = fold(p["bn3"], p["b2"][0])
    bn1 = pack_bn(s1, t1, C)
    bn2 = pack_bn(s2, t2, F1)
    bn3 = pack_bn(s3, t3, F2)

    # ---- pack weights host-side (channel-padded, grouped per kernel row dh) ----
    w1t = jnp.zeros((CPAD, CPAD), f32).at[:F1, :C].set(p["w1"].T)   # (Cout, Cin)

    def pack3x3(w, cin, cout):
        wz = jnp.zeros((3, 3, CPAD, CPAD), f32).at[:, :, :cin, :cout].set(w)
        # -> (3 dh-groups, Cout, 3*Cin), K index = dw*CPAD + cin
        return wz.reshape(3, 3 * CPAD, CPAD).transpose(0, 2, 1)

    w2p = pack3x3(p["w2"], F1, F2)
    w3p = pack3x3(p["w3"], F2, F3)
    b3 = jnp.zeros((CPAD, 1), f32).at[:F3, 0].set(p["b3"][0])

    # ---- spatially zero-padded, channel-padded, lane-dense, B-folded input ----
    xp = jnp.pad(x_nchw.astype(f32), ((0, 0), (0, CPAD - C), (1, 1), (1, 1)))
    xp = xp.reshape(N, CPAD, Pimg)
    xp = jnp.pad(xp, ((0, 0), (0, 0), (0, PPAD - Pimg)))
    xp = xp.reshape(G, B, CPAD, PPAD).transpose(0, 2, 1, 3).reshape(G, CPAD, LANES)

    mask = jnp.pad(jnp.ones((H, W), f32), 1).reshape(1, Pimg)       # 1 interior, 0 halo
    mask = jnp.pad(mask, ((0, 0), (0, PPAD - Pimg)))                # 0 on pad lanes
    mask = jnp.tile(mask, (1, B))                                   # (1, LANES)

    def const(shape):
        return pl.BlockSpec(shape, lambda n: (0,) * len(shape))

    grid_spec = pltpu.PrefetchScalarGridSpec(
        num_scalar_prefetch=0,
        grid=(G,),                                              # B images per step
        in_specs=[
            pl.BlockSpec((1, CPAD, LANES), lambda n: (n, 0, 0)),  # folded input
            const((1, LANES)),                                    # interior mask
            const((CPAD, 2)), const((CPAD, CPAD)),                # bn1, w1^T
            const((CPAD, 2)), const((3, CPAD, 3 * CPAD)),         # bn2, w2 groups
            const((CPAD, 2)), const((3, CPAD, 3 * CPAD)),         # bn3, w3 groups
            const((CPAD, 1)),                                     # b3
        ],
        out_specs=pl.BlockSpec((1, CPAD, LANES), lambda n: (n, 0, 0)),
    )

    out = pl.pallas_call(
        kernel,
        out_shape=jax.ShapeDtypeStruct((G, CPAD, LANES), f32),
        grid_spec=grid_spec,
        compiler_params=pltpu.CompilerParams(dimension_semantics=("parallel",)),
    )(xp, mask, bn1, w1t, bn2, w2p, bn3, w3p, b3)

    # ---- unfold lanes, drop channel / halo / lane padding -> NCHW ----
    out = out.reshape(G, CPAD, B, PPAD).transpose(0, 2, 1, 3).reshape(N, CPAD, PPAD)
    out = out[:, :C, :Pimg].reshape(N, C, H + 2, W + 2)[:, :, 1:H + 1, 1:W + 1]
    return out


# ---------------------------------------------------------------------------
# Deterministic synthetic parameters + pure-JAX reference
# ---------------------------------------------------------------------------
def init_params(key, in_c, num_filters, kernel_size):
    f1, f2, f3 = num_filters
    kh, kw = kernel_size
    keys = jax.random.split(key, 9)

    def bn(k, c):
        k0, k1, k2, k3 = jax.random.split(k, 4)
        gamma = 1.0 + 0.1 * jax.random.normal(k0, (c,))
        beta = 0.1 * jax.random.normal(k1, (c,))
        mean = 0.1 * jax.random.normal(k2, (c,))
        var = jax.random.uniform(k3, (c,), minval=0.5, maxval=1.5)
        return jnp.stack([gamma, beta, mean, var]).astype(jnp.float32)

    return {
        "bn1": bn(keys[0], in_c),
        "w1": 0.2 * jax.random.normal(keys[1], (in_c, f1), jnp.float32),
        "b1": 0.05 * jax.random.normal(keys[2], (1, f1), jnp.float32),
        "bn2": bn(keys[3], f1),
        "w2": 0.2 * jax.random.normal(keys[4], (kh, kw, f1, f2), jnp.float32),
        "b2": 0.05 * jax.random.normal(keys[5], (1, f2), jnp.float32),
        "bn3": bn(keys[6], f2),
        "w3": 0.2 * jax.random.normal(keys[7], (kh, kw, f2, f3), jnp.float32),
        "b3": 0.05 * jax.random.normal(keys[8], (1, f3), jnp.float32),
    }


def reference(x_nchw, p):
    x = jnp.transpose(x_nchw, (0, 2, 3, 1)).astype(jnp.float32)

    def bn_act(z, bn):
        return jnp.maximum((z - bn[2]) * lax.rsqrt(bn[3] + EPS) * bn[0] + bn[1], 0.0)

    a = bn_act(x, p["bn1"])
    y1 = jnp.einsum("nhwc,cf->nhwf", a, p["w1"]) + p["b1"][0]
    a = bn_act(y1, p["bn2"])
    y2 = lax.conv_general_dilated(a, p["w2"], (1, 1), "SAME",
                                  dimension_numbers=("NHWC", "HWIO", "NHWC")) + p["b2"][0]
    a = bn_act(y2, p["bn3"])
    y3 = lax.conv_general_dilated(a, p["w3"], (1, 1), "SAME",
                                  dimension_numbers=("NHWC", "HWIO", "NHWC")) + p["b3"][0]
    return jnp.transpose(y3 + x, (0, 3, 1, 2))


if __name__ == "__main__":
    key = jax.random.PRNGKey(0)
    kx, kp = jax.random.split(key)

    N, C, H, W = 2, 4, 16, 16
    num_filters = (6, 8, C)          # filter3 == in_c so the residual add is valid
    kernel_size = (3, 3)

    x = jax.random.normal(kx, (N, C, H, W), jnp.float32)
    params = init_params(kp, C, num_filters, kernel_size)

    out = jax.block_until_ready(pre_identity_block(x, params))
    ref = reference(x, params)

    assert out.shape == (N, C, H, W), out.shape
    err = float(jnp.max(jnp.abs(out - ref)))
    assert err < 1e-4, f"max abs error {err}"
    print("KERNEL_OK")
</pallas_src>

<mosaic_0001>
module attributes {stable_mosaic.version = 11 : i64} {
  func.func @kernel(%arg0: i32, %arg1: memref<1x8x768xf32, #tpu.memory_space<vmem>>, %arg2: memref<1x768xf32, #tpu.memory_space<vmem>>, %arg3: memref<8x2xf32, #tpu.memory_space<vmem>>, %arg4: memref<8x8xf32, #tpu.memory_space<vmem>>, %arg5: memref<8x2xf32, #tpu.memory_space<vmem>>, %arg6: memref<3x8x24xf32, #tpu.memory_space<vmem>>, %arg7: memref<8x2xf32, #tpu.memory_space<vmem>>, %arg8: memref<3x8x24xf32, #tpu.memory_space<vmem>>, %arg9: memref<8x1xf32, #tpu.memory_space<vmem>>, %arg10: memref<1x8x768xf32, #tpu.memory_space<vmem>>) attributes {dimension_semantics = [#tpu.dimension_semantics<parallel>], iteration_bounds = array<i64: 1>, scalar_prefetch = 0 : i64, scratch_operands = 0 : i64, tpu.core_type = #tpu.core_type<tc>, window_params = [{transform_indices = @transform_0, window_bounds = array<i64: 1, 8, 768>}, {pipeline_mode = #tpu.pipeline_mode<synchronous>, transform_indices = @transform_1, window_bounds = array<i64: 1, 768>}, {pipeline_mode = #tpu.pipeline_mode<synchronous>, transform_indices = @transform_2, window_bounds = array<i64: 8, 2>}, {pipeline_mode = #tpu.pipeline_mode<synchronous>, transform_indices = @transform_3, window_bounds = array<i64: 8, 8>}, {pipeline_mode = #tpu.pipeline_mode<synchronous>, transform_indices = @transform_4, window_bounds = array<i64: 8, 2>}, {pipeline_mode = #tpu.pipeline_mode<synchronous>, transform_indices = @transform_5, window_bounds = array<i64: 3, 8, 24>}, {pipeline_mode = #tpu.pipeline_mode<synchronous>, transform_indices = @transform_6, window_bounds = array<i64: 8, 2>}, {pipeline_mode = #tpu.pipeline_mode<synchronous>, transform_indices = @transform_7, window_bounds = array<i64: 3, 8, 24>}, {pipeline_mode = #tpu.pipeline_mode<synchronous>, transform_indices = @transform_8, window_bounds = array<i64: 8, 1>}, {transform_indices = @transform_9, window_bounds = array<i64: 1, 8, 768>}]} {
    %c0 = arith.constant 0 : index
    %c0_0 = arith.constant 0 : index
    %c0_1 = arith.constant 0 : index
    %0 = vector.load %arg1[%c0, %c0_0, %c0_1] : memref<1x8x768xf32, #tpu.memory_space<vmem>>, vector<1x8x768xf32>
    %1 = vector.shape_cast %0 : vector<1x8x768xf32> to vector<8x768xf32>
    %c0_2 = arith.constant 0 : index
    %c0_3 = arith.constant 0 : index
    %2 = vector.load %arg2[%c0_2, %c0_3] : memref<1x768xf32, #tpu.memory_space<vmem>>, vector<1x768xf32>
    %c0_4 = arith.constant 0 : index
    %c0_5 = arith.constant 0 : index
    %3 = vector.load %arg3[%c0_4, %c0_5] : memref<8x2xf32, #tpu.memory_space<vmem>>, vector<8x1xf32>
    %4 = vector.broadcast %3 : vector<8x1xf32> to vector<8x768xf32>
    %5 = arith.mulf %1, %4 : vector<8x768xf32>
    %c0_6 = arith.constant 0 : index
    %c1 = arith.constant 1 : index
    %6 = vector.load %arg3[%c0_6, %c1] : memref<8x2xf32, #tpu.memory_space<vmem>>, vector<8x1xf32>
    %7 = vector.broadcast %6 : vector<8x1xf32> to vector<8x768xf32>
    %8 = arith.addf %5, %7 : vector<8x768xf32>
    %cst = arith.constant 0.000000e+00 : f32
    %9 = vector.broadcast %cst : f32 to vector<8x768xf32>
    %10 = arith.maximumf %8, %9 : vector<8x768xf32>
    %c0_7 = arith.constant 0 : index
    %c0_8 = arith.constant 0 : index
    %11 = vector.load %arg4[%c0_7, %c0_8] : memref<8x8xf32, #tpu.memory_space<vmem>>, vector<8x8xf32>
    %cst_9 = arith.constant dense<0.000000e+00> : vector<8x768xf32>
    %12 = tpu.matmul %11, %10, %cst_9 {dimension_numbers = #tpu.dot_dimension_numbers<[1], [0], [0], [1], [0, 0, 1, 1], [], []>} : vector<8x8xf32>, vector<8x768xf32>, vector<8x768xf32> -> vector<8x768xf32>
    %c0_10 = arith.constant 0 : index
    %c0_11 = arith.constant 0 : index
    %13 = vector.load %arg5[%c0_10, %c0_11] : memref<8x2xf32, #tpu.memory_space<vmem>>, vector<8x1xf32>
    %14 = vector.broadcast %13 : vector<8x1xf32> to vector<8x768xf32>
    %15 = arith.mulf %12, %14 : vector<8x768xf32>
    %c0_12 = arith.constant 0 : index
    %c1_13 = arith.constant 1 : index
    %16 = vector.load %arg5[%c0_12, %c1_13] : memref<8x2xf32, #tpu.memory_space<vmem>>, vector<8x1xf32>
    %17 = vector.broadcast %16 : vector<8x1xf32> to vector<8x768xf32>
    %18 = arith.addf %15, %17 : vector<8x768xf32>
    %cst_14 = arith.constant 0.000000e+00 : f32
    %19 = vector.broadcast %cst_14 : f32 to vector<8x768xf32>
    %20 = arith.maximumf %18, %19 : vector<8x768xf32>
    %21 = vector.broadcast %2 : vector<1x768xf32> to vector<8x768xf32>
    %22 = arith.mulf %20, %21 : vector<8x768xf32>
    %c19_i32 = arith.constant 19 : i32
    %23 = tpu.dynamic_rotate %22 by %c19_i32 dim 1 : vector<8x768xf32>, i32 -> vector<8x768xf32>
    %c18_i32 = arith.constant 18 : i32
    %24 = tpu.dynamic_rotate %22 by %c18_i32 dim 1 : vector<8x768xf32>, i32 -> vector<8x768xf32>
    %c17_i32 = arith.constant 17 : i32
    %25 = tpu.dynamic_rotate %22 by %c17_i32 dim 1 : vector<8x768xf32>, i32 -> vector<8x768xf32>
    %26 = tpu.concatenate %23, %24, %25 in 0 : vector<8x768xf32>, vector<8x768xf32>, vector<8x768xf32> -> vector<24x768xf32>
    %c0_15 = arith.constant 0 : index
    %c0_16 = arith.constant 0 : index
    %c0_17 = arith.constant 0 : index
    %27 = vector.load %arg6[%c0_15, %c0_16, %c0_17] : memref<3x8x24xf32, #tpu.memory_space<vmem>>, vector<1x8x24xf32>
    %28 = vector.shape_cast %27 : vector<1x8x24xf32> to vector<8x24xf32>
    %cst_18 = arith.constant dense<0.000000e+00> : vector<8x768xf32>
    %29 = tpu.matmul %28, %26, %cst_18 {dimension_numbers = #tpu.dot_dimension_numbers<[1], [0], [0], [1], [0, 0, 1, 1], [], []>} : vector<8x24xf32>, vector<24x768xf32>, vector<8x768xf32> -> vector<8x768xf32>
    %c1_i32 = arith.constant 1 : i32
    %30 = tpu.dynamic_rotate %22 by %c1_i32 dim 1 : vector<8x768xf32>, i32 -> vector<8x768xf32>
    %c767_i32 = arith.constant 767 : i32
    %31 = tpu.dynamic_rotate %22 by %c767_i32 dim 1 : vector<8x768xf32>, i32 -> vector<8x768xf32>
    %32 = tpu.concatenate %30, %22, %31 in 0 : vector<8x768xf32>, vector<8x768xf32>, vector<8x768xf32> -> vector<24x768xf32>
    %c1_19 = arith.constant 1 : index
    %c0_20 = arith.constant 0 : index
    %c0_21 = arith.constant 0 : index
    %33 = vector.load %arg6[%c1_19, %c0_20, %c0_21] : memref<3x8x24xf32, #tpu.memory_space<vmem>>, vector<1x8x24xf32>
    %34 = vector.shape_cast %33 : vector<1x8x24xf32> to vector<8x24xf32>
    %cst_22 = arith.constant dense<0.000000e+00> : vector<8x768xf32>
    %35 = tpu.matmul %34, %32, %cst_22 {dimension_numbers = #tpu.dot_dimension_numbers<[1], [0], [0], [1], [0, 0, 1, 1], [], []>} : vector<8x24xf32>, vector<24x768xf32>, vector<8x768xf32> -> vector<8x768xf32>
    %36 = arith.addf %29, %35 : vector<8x768xf32>
    %c751_i32 = arith.constant 751 : i32
    %37 = tpu.dynamic_rotate %22 by %c751_i32 dim 1 : vector<8x768xf32>, i32 -> vector<8x768xf32>
    %c750_i32 = arith.constant 750 : i32
    %38 = tpu.dynamic_rotate %22 by %c750_i32 dim 1 : vector<8x768xf32>, i32 -> vector<8x768xf32>
    %c749_i32 = arith.constant 749 : i32
    %39 = tpu.dynamic_rotate %22 by %c749_i32 dim 1 : vector<8x768xf32>, i32 -> vector<8x768xf32>
    %40 = tpu.concatenate %37, %38, %39 in 0 : vector<8x768xf32>, vector<8x768xf32>, vector<8x768xf32> -> vector<24x768xf32>
    %c2 = arith.constant 2 : index
    %c0_23 = arith.constant 0 : index
    %c0_24 = arith.constant 0 : index
    %41 = vector.load %arg6[%c2, %c0_23, %c0_24] : memref<3x8x24xf32, #tpu.memory_space<vmem>>, vector<1x8x24xf32>
    %42 = vector.shape_cast %41 : vector<1x8x24xf32> to vector<8x24xf32>
    %cst_25 = arith.constant dense<0.000000e+00> : vector<8x768xf32>
    %43 = tpu.matmul %42, %40, %cst_25 {dimension_numbers = #tpu.dot_dimension_numbers<[1], [0], [0], [1], [0, 0, 1, 1], [], []>} : vector<8x24xf32>, vector<24x768xf32>, vector<8x768xf32> -> vector<8x768xf32>
    %44 = arith.addf %36, %43 : vector<8x768xf32>
    %c0_26 = arith.constant 0 : index
    %c0_27 = arith.constant 0 : index
    %45 = vector.load %arg7[%c0_26, %c0_27] : memref<8x2xf32, #tpu.memory_space<vmem>>, vector<8x1xf32>
    %46 = vector.broadcast %45 : vector<8x1xf32> to vector<8x768xf32>
    %47 = arith.mulf %44, %46 : vector<8x768xf32>
    %c0_28 = arith.constant 0 : index
    %c1_29 = arith.constant 1 : index
    %48 = vector.load %arg7[%c0_28, %c1_29] : memref<8x2xf32, #tpu.memory_space<vmem>>, vector<8x1xf32>
    %49 = vector.broadcast %48 : vector<8x1xf32> to vector<8x768xf32>
    %50 = arith.addf %47, %49 : vector<8x768xf32>
    %cst_30 = arith.constant 0.000000e+00 : f32
    %51 = vector.broadcast %cst_30 : f32 to vector<8x768xf32>
    %52 = arith.maximumf %50, %51 : vector<8x768xf32>
    %53 = vector.broadcast %2 : vector<1x768xf32> to vector<8x768xf32>
    %54 = arith.mulf %52, %53 : vector<8x768xf32>
    %c19_i32_31 = arith.constant 19 : i32
    %55 = tpu.dynamic_rotate %54 by %c19_i32_31 dim 1 : vector<8x768xf32>, i32 -> vector<8x768xf32>
    %c18_i32_32 = arith.constant 18 : i32
    %56 = tpu.dynamic_rotate %54 by %c18_i32_32 dim 1 : vector<8x768xf32>, i32 -> vector<8x768xf32>
    %c17_i32_33 = arith.constant 17 : i32
    %57 = tpu.dynamic_rotate %54 by %c17_i32_33 dim 1 : vector<8x768xf32>, i32 -> vector<8x768xf32>
    %58 = tpu.concatenate %55, %56, %57 in 0 : vector<8x768xf32>, vector<8x768xf32>, vector<8x768xf32> -> vector<24x768xf32>
    %c0_34 = arith.constant 0 : index
    %c0_35 = arith.constant 0 : index
    %c0_36 = arith.constant 0 : index
    %59 = vector.load %arg8[%c0_34, %c0_35, %c0_36] : memref<3x8x24xf32, #tpu.memory_space<vmem>>, vector<1x8x24xf32>
    %60 = vector.shape_cast %59 : vector<1x8x24xf32> to vector<8x24xf32>
    %cst_37 = arith.constant dense<0.000000e+00> : vector<8x768xf32>
    %61 = tpu.matmul %60, %58, %cst_37 {dimension_numbers = #tpu.dot_dimension_numbers<[1], [0], [0], [1], [0, 0, 1, 1], [], []>} : vector<8x24xf32>, vector<24x768xf32>, vector<8x768xf32> -> vector<8x768xf32>
    %c1_i32_38 = arith.constant 1 : i32
    %62 = tpu.dynamic_rotate %54 by %c1_i32_38 dim 1 : vector<8x768xf32>, i32 -> vector<8x768xf32>
    %c767_i32_39 = arith.constant 767 : i32
    %63 = tpu.dynamic_rotate %54 by %c767_i32_39 dim 1 : vector<8x768xf32>, i32 -> vector<8x768xf32>
    %64 = tpu.concatenate %62, %54, %63 in 0 : vector<8x768xf32>, vector<8x768xf32>, vector<8x768xf32> -> vector<24x768xf32>
    %c1_40 = arith.constant 1 : index
    %c0_41 = arith.constant 0 : index
    %c0_42 = arith.constant 0 : index
    %65 = vector.load %arg8[%c1_40, %c0_41, %c0_42] : memref<3x8x24xf32, #tpu.memory_space<vmem>>, vector<1x8x24xf32>
    %66 = vector.shape_cast %65 : vector<1x8x24xf32> to vector<8x24xf32>
    %cst_43 = arith.constant dense<0.000000e+00> : vector<8x768xf32>
    %67 = tpu.matmul %66, %64, %cst_43 {dimension_numbers = #tpu.dot_dimension_numbers<[1], [0], [0], [1], [0, 0, 1, 1], [], []>} : vector<8x24xf32>, vector<24x768xf32>, vector<8x768xf32> -> vector<8x768xf32>
    %68 = arith.addf %61, %67 : vector<8x768xf32>
    %c751_i32_44 = arith.constant 751 : i32
    %69 = tpu.dynamic_rotate %54 by %c751_i32_44 dim 1 : vector<8x768xf32>, i32 -> vector<8x768xf32>
    %c750_i32_45 = arith.constant 750 : i32
    %70 = tpu.dynamic_rotate %54 by %c750_i32_45 dim 1 : vector<8x768xf32>, i32 -> vector<8x768xf32>
    %c749_i32_46 = arith.constant 749 : i32
    %71 = tpu.dynamic_rotate %54 by %c749_i32_46 dim 1 : vector<8x768xf32>, i32 -> vector<8x768xf32>
    %72 = tpu.concatenate %69, %70, %71 in 0 : vector<8x768xf32>, vector<8x768xf32>, vector<8x768xf32> -> vector<24x768xf32>
    %c2_47 = arith.constant 2 : index
    %c0_48 = arith.constant 0 : index
    %c0_49 = arith.constant 0 : index
    %73 = vector.load %arg8[%c2_47, %c0_48, %c0_49] : memref<3x8x24xf32, #tpu.memory_space<vmem>>, vector<1x8x24xf32>
    %74 = vector.shape_cast %73 : vector<1x8x24xf32> to vector<8x24xf32>
    %cst_50 = arith.constant dense<0.000000e+00> : vector<8x768xf32>
    %75 = tpu.matmul %74, %72, %cst_50 {dimension_numbers = #tpu.dot_dimension_numbers<[1], [0], [0], [1], [0, 0, 1, 1], [], []>} : vector<8x24xf32>, vector<24x768xf32>, vector<8x768xf32> -> vector<8x768xf32>
    %76 = arith.addf %68, %75 : vector<8x768xf32>
    %c0_51 = arith.constant 0 : index
    %c0_52 = arith.constant 0 : index
    %77 = vector.load %arg9[%c0_51, %c0_52] : memref<8x1xf32, #tpu.memory_space<vmem>>, vector<8x1xf32>
    %78 = vector.broadcast %77 : vector<8x1xf32> to vector<8x768xf32>
    %79 = arith.addf %76, %78 : vector<8x768xf32>
    %80 = arith.addf %79, %1 : vector<8x768xf32>
    %c0_53 = arith.constant 0 : index
    %c0_54 = arith.constant 0 : index
    %c0_55 = arith.constant 0 : index
    %81 = vector.load %arg10[%c0_53, %c0_54, %c0_55] : memref<1x8x768xf32, #tpu.memory_space<vmem>>, vector<1x8x768xf32>
    %82 = vector.shape_cast %81 : vector<1x8x768xf32> to vector<8x768xf32>
    %83 = vector.shape_cast %80 : vector<8x768xf32> to vector<1x8x768xf32>
    tpu.vector_store %arg10[%c0_53, %c0_54, %c0_55], %83 {strides = array<i32>} : memref<1x8x768xf32, #tpu.memory_space<vmem>>, vector<1x8x768xf32>,
    return
  }
  func.func @transform_0(%arg0: i32) -> (i32, i32, i32) {
    %c0_i32 = arith.constant 0 : i32
    %c0_i32_0 = arith.constant 0 : i32
    %c0_i32_1 = arith.constant 0 : i32
    return %arg0, %c0_i32, %c0_i32_0 : i32, i32, i32
  }
  func.func @transform_1(%arg0: i32) -> (i32, i32) {
    %c0_i32 = arith.constant 0 : i32
    %c0_i32_0 = arith.constant 0 : i32
    %c0_i32_1 = arith.constant 0 : i32
    return %c0_i32, %c0_i32_0 : i32, i32
  }
  func.func @transform_2(%arg0: i32) -> (i32, i32) {
    %c0_i32 = arith.constant 0 : i32
    %c0_i32_0 = arith.constant 0 : i32
    %c0_i32_1 = arith.constant 0 : i32
    return %c0_i32, %c0_i32_0 : i32, i32
  }
  func.func @transform_3(%arg0: i32) -> (i32, i32) {
    %c0_i32 = arith.constant 0 : i32
    %c0_i32_0 = arith.constant 0 : i32
    %c0_i32_1 = arith.constant 0 : i32
    return %c0_i32, %c0_i32_0 : i32, i32
  }
  func.func @transform_4(%arg0: i32) -> (i32, i32) {
    %c0_i32 = arith.constant 0 : i32
    %c0_i32_0 = arith.constant 0 : i32
    %c0_i32_1 = arith.constant 0 : i32
    return %c0_i32, %c0_i32_0 : i32, i32
  }
  func.func @transform_5(%arg0: i32) -> (i32, i32, i32) {
    %c0_i32 = arith.constant 0 : i32
    %c0_i32_0 = arith.constant 0 : i32
    %c0_i32_1 = arith.constant 0 : i32
    %c0_i32_2 = arith.constant 0 : i32
    return %c0_i32, %c0_i32_0, %c0_i32_1 : i32, i32, i32
  }
  func.func @transform_6(%arg0: i32) -> (i32, i32) {
    %c0_i32 = arith.constant 0 : i32
    %c0_i32_0 = arith.constant 0 : i32
    %c0_i32_1 = arith.constant 0 : i32
    return %c0_i32, %c0_i32_0 : i32, i32
  }
  func.func @transform_7(%arg0: i32) -> (i32, i32, i32) {
    %c0_i32 = arith.constant 0 : i32
    %c0_i32_0 = arith.constant 0 : i32
    %c0_i32_1 = arith.constant 0 : i32
    %c0_i32_2 = arith.constant 0 : i32
    return %c0_i32, %c0_i32_0, %c0_i32_1 : i32, i32, i32
  }
  func.func @transform_8(%arg0: i32) -> (i32, i32) {
    %c0_i32 = arith.constant 0 : i32
    %c0_i32_0 = arith.constant 0 : i32
    %c0_i32_1 = arith.constant 0 : i32
    return %c0_i32, %c0_i32_0 : i32, i32
  }
  func.func @transform_9(%arg0: i32) -> (i32, i32, i32) {
    %c0_i32 = arith.constant 0 : i32
    %c0_i32_0 = arith.constant 0 : i32
    %c0_i32_1 = arith.constant 0 : i32
    return %arg0, %c0_i32, %c0_i32_0 : i32, i32, i32
  }
}

</mosaic_0001>

<llo_original>
// kernel: tpu_custom_call.1
$region0: #{tpu_custom_call.1}
  #allocation0 [shape = 'u32[]', space=smem, size = 0x4, offset = 0x4, fixed_abs, tag = 'smem constant byte address 0x4 - core index']
  #allocation1 [shape = 'u32[72,128]{1,0:T(1,128)}', space=vmem, size = 0x9000, scoped, tag = 'internal scratch']
  %s0 = inlined_call_operand.hbm [shape: f32[1,8,768], index: 0, kind: input, shape index: {}]
  %s1 = inlined_call_operand.vmem [shape: f32[1,768], index: 1, kind: input, shape index: {}]
  %s2 = inlined_call_operand.vmem [shape: f32[8,2], index: 2, kind: input, shape index: {}]
  %s3 = inlined_call_operand.vmem [shape: f32[8,8], index: 3, kind: input, shape index: {}]
  %s4 = inlined_call_operand.vmem [shape: f32[8,2], index: 4, kind: input, shape index: {}]
  %s5 = inlined_call_operand.hbm [shape: f32[3,8,24], index: 5, kind: input, shape index: {}]
  %s6 = inlined_call_operand.vmem [shape: f32[8,2], index: 6, kind: input, shape index: {}]
  %s7 = inlined_call_operand.hbm [shape: f32[3,8,24], index: 7, kind: input, shape index: {}]
  %s8 = inlined_call_operand.vmem [shape: f32[8,1], index: 8, kind: input, shape index: {}]
  %s9 = inlined_call_operand.hbm [shape: f32[1,8,768], index: 9, kind: output, shape index: {}]
  %s10 = sld [smem:[#allocation0]]
  $region58: #{tpu_custom_call.1} parent=0
    _
  %s12 = ssub.s32 1, %s10
  %s13 = scalar_select 0, %s12, %s10
  $region1: #{tpu_custom_call.1} parent=0
    #allocation2 [shape = 'u8[24576]{0}', space=vmem, size = 0x6000, scoped, tag = 'input window, operand 0, single buffered']
    #allocation3 [shape = 's32[1]{0}', space=sflag, size = 0x4, scoped, tag = 'scoped memory for tpu_custom_call.1']
    #allocation4 [shape = 's32[1]{0}', space=sflag, size = 0x4, scoped, tag = 'scoped memory for tpu_custom_call.1']
    #allocation5 [shape = 'u8[12288]{0}', space=vmem, size = 0x3000, scoped, tag = 'input window, operand 5, single buffered']
    #allocation6 [shape = 's32[1]{0}', space=sflag, size = 0x4, scoped, tag = 'scoped memory for tpu_custom_call.1']
    #allocation7 [shape = 'u8[12288]{0}', space=vmem, size = 0x3000, scoped, tag = 'input window, operand 7, single buffered']
    #allocation8 [shape = 'u8[24576]{0}', space=vmem, size = 0x6000, scoped, tag = 'output window, operand 0, single buffered']
    %14 = vsyncpa [#allocation3], 0
    %15 = vsyncpa [#allocation6], 0
    %16 = vsyncpa [#allocation4], 0
    // Predicated region
    $region2: #{tpu_custom_call.1} parent=1 // pred_check
      _
    $region3: #{tpu_custom_call.1} parent=1 // pred_check_branch
      %18 = sbr.rel (0) target = $region5
    $region4: #{tpu_custom_call.1} parent=1 // pred_region
      %20 = vsyncadd [#allocation3], 0
      %s22 = sshll.u32 %s0, 4
      %s23 = int_to_ptr.hbm [resolvable:$true] %s22
      %s24 = sshll.u32 [#allocation2], 4
      %s25 = int_to_ptr.vmem [resolvable:$true] %s24
      %27 = dma.hbm_to_vmem [thread:$0]  %s23, 768, %s25, [#allocation3]
    $region5: #{tpu_custom_call.1} parent=1 // pred_fallthru
      _
    // Predicated region
    $region6: #{tpu_custom_call.1} parent=1 // pred_check
      _
    $region7: #{tpu_custom_call.1} parent=1 // pred_check_branch
      %29 = sbr.rel (0) target = $region9
    $region8: #{tpu_custom_call.1} parent=1 // pred_region
      _
    $region9: #{tpu_custom_call.1} parent=1 // pred_fallthru
      _
    // Predicated region
    $region10: #{tpu_custom_call.1} parent=1 // pred_check
      _
    $region11: #{tpu_custom_call.1} parent=1 // pred_check_branch
      %31 = sbr.rel (0) target = $region13
    $region12: #{tpu_custom_call.1} parent=1 // pred_region
      _
    $region13: #{tpu_custom_call.1} parent=1 // pred_fallthru
      _
    // Predicated region
    $region14: #{tpu_custom_call.1} parent=1 // pred_check
      _
    $region15: #{tpu_custom_call.1} parent=1 // pred_check_branch
      %33 = sbr.rel (0) target = $region17
    $region16: #{tpu_custom_call.1} parent=1 // pred_region
      _
    $region17: #{tpu_custom_call.1} parent=1 // pred_fallthru
      _
    // Predicated region
    $region18: #{tpu_custom_call.1} parent=1 // pred_check
      _
    $region19: #{tpu_custom_call.1} parent=1 // pred_check_branch
      %35 = sbr.rel (0) target = $region21
    $region20: #{tpu_custom_call.1} parent=1 // pred_region
      _
    $region21: #{tpu_custom_call.1} parent=1 // pred_fallthru
      _
    // Predicated region
    $region22: #{tpu_custom_call.1} parent=1 // pred_check
      _
    $region23: #{tpu_custom_call.1} parent=1 // pred_check_branch
      %37 = sbr.rel (0) target = $region25
    $region24: #{tpu_custom_call.1} parent=1 // pred_region
      %39 = vsyncadd [#allocation6], 0
      %s40 = sshll.u32 %s5, 4
      %s41 = int_to_ptr.hbm [resolvable:$true] %s40
      %s42 = sshll.u32 [#allocation5], 4
      %s43 = int_to_ptr.vmem [resolvable:$true] %s42
      %48 = dma.hbm_to_vmem [thread:$0]  %s41, 384, %s43, [#allocation6], 128, 128, 8
    $region25: #{tpu_custom_call.1} parent=1 // pred_fallthru
      _
    // Predicated region
    $region26: #{tpu_custom_call.1} parent=1 // pred_check
      _
    $region27: #{tpu_custom_call.1} parent=1 // pred_check_branch
      %50 = sbr.rel (0) target = $region29
    $region28: #{tpu_custom_call.1} parent=1 // pred_region
      _
    $region29: #{tpu_custom_call.1} parent=1 // pred_fallthru
      _
    // Predicated region
    $region30: #{tpu_custom_call.1} parent=1 // pred_check
      _
    $region31: #{tpu_custom_call.1} parent=1 // pred_check_branch
      %52 = sbr.rel (0) target = $region33
    $region32: #{tpu_custom_call.1} parent=1 // pred_region
      %54 = vsyncadd [#allocation6], 0
      %s55 = sshll.u32 %s7, 4
      %s56 = int_to_ptr.hbm [resolvable:$true] %s55
      %s57 = sshll.u32 [#allocation7], 4
      %s58 = int_to_ptr.vmem [resolvable:$true] %s57
      %63 = dma.hbm_to_vmem [thread:$0]  %s56, 384, %s58, [#allocation6], 128, 128, 8
    $region33: #{tpu_custom_call.1} parent=1 // pred_fallthru
      _
    // Predicated region
    $region34: #{tpu_custom_call.1} parent=1 // pred_check
      _
    $region35: #{tpu_custom_call.1} parent=1 // pred_check_branch
      %65 = sbr.rel (0) target = $region37
    $region36: #{tpu_custom_call.1} parent=1 // pred_region
      _
    $region37: #{tpu_custom_call.1} parent=1 // pred_fallthru
      _
    // Predicated region
    $region38: #{tpu_custom_call.1} parent=1 // pred_check
      _
    $region39: #{tpu_custom_call.1} parent=1 // pred_check_branch
      %67 = sbr.rel (0) target = $region41
    $region40: #{tpu_custom_call.1} parent=1 // pred_region
      %69 = dma.done [#allocation3], 768
    $region41: #{tpu_custom_call.1} parent=1 // pred_fallthru
      _
    // Predicated region
    $region42: #{tpu_custom_call.1} parent=1 // pred_check
      _
    $region43: #{tpu_custom_call.1} parent=1 // pred_check_branch
      %71 = sbr.rel (0) target = $region45
    $region44: #{tpu_custom_call.1} parent=1 // pred_region
      %73 = dma.done [#allocation6], 384
    $region45: #{tpu_custom_call.1} parent=1 // pred_fallthru
      _
    // Predicated region
    $region46: #{tpu_custom_call.1} parent=1 // pred_check
      _
    $region47: #{tpu_custom_call.1} parent=1 // pred_check_branch
      %75 = sbr.rel (0) target = $region49
    $region48: #{tpu_custom_call.1} parent=1 // pred_region
      %77 = dma.done [#allocation6], 384
    $region49: #{tpu_custom_call.1} parent=1 // pred_fallthru
      _
    %v78 = vld [vmem:[#allocation2] sm:$0xff]
    %v79 = vld [vmem:[#allocation2 + $0x8] sm:$0xff]
    %v80 = vld [vmem:[#allocation2 + $0x10] sm:$0xff]
    %v81 = vld [vmem:[#allocation2 + $0x18] sm:$0xff]
    %v82 = vld [vmem:[#allocation2 + $0x20] sm:$0xff]
    %v83 = vld [vmem:[#allocation2 + $0x28] sm:$0xff]
    %v84 = vld [vmem:[%s1] sm:$0x3f]
    %v85 = vld [vmem:[%s2] sm:$0xff]
    %87 = vset.pattern.permute.xlu0 0
    %88 = vperm.xlu0 %87, %v85
    %v89 = vpop.permute.xlu0 %88
    %v91 = vmul.f32 %v78, %v89
    %v92 = vmul.f32 %v79, %v89
    %v93 = vmul.f32 %v80, %v89
    %v94 = vmul.f32 %v81, %v89
    %v95 = vmul.f32 %v82, %v89
    %v96 = vmul.f32 %v83, %v89
    %97 = vset.pattern.permute.xlu0 1
    %98 = vperm.xlu0 %97, %v85
    %v99 = vpop.permute.xlu0 %98
    %v101 = vadd.f32 %v91, %v99
    %v102 = vadd.f32 %v92, %v99
    %v103 = vadd.f32 %v93, %v99
    %v104 = vadd.f32 %v94, %v99
    %v105 = vadd.f32 %v95, %v99
    %v106 = vadd.f32 %v96, %v99
    %v107 = vmax.f32 %v101, 0.0
    %v108 = vmax.f32 %v102, 0.0
    %v109 = vmax.f32 %v103, 0.0
    %v110 = vmax.f32 %v104, 0.0
    %v111 = vmax.f32 %v105, 0.0
    %v112 = vmax.f32 %v106, 0.0
    %v113 = vld [vmem:[%s3] sm:$0xff]
    %vm114 = vcmask 64512
    %v116 = vsel %vm114, %v113, 0
    %118 = vmatpush.msra.mxu0 0.0
    %119 = vmatpush.msra.mxu0 0.0
    %120 = vmatpush.msra.mxu0 0.0
    %121 = vmatpush.msra.mxu0 0.0
    %122 = vmatpush.msra.mxu0 0.0
    %123 = vmatpush.msra.mxu0 0.0
    %124 = vmatpush.msra.mxu0 0.0
    %125 = vmatpush.msra.mxu0 0.0
    %126 = vmatpush.msra.mxu0 0.0
    %127 = vmatpush.msra.mxu0 0.0
    %128 = vmatpush.msra.mxu0 0.0
    %129 = vmatpush.msra.mxu0 0.0
    %130 = vmatpush.msra.mxu0 0.0
    %131 = vmatpush.msra.mxu0 0.0
    %132 = vmatpush.msra.mxu0 0.0
    %133 = vmatpush.msra.mxu0 %v107
    %134 = vmatmul.f32.gmra.mxu0 %v116
    %v135 = vpop.f32.mrf.mxu0
    %v136 = vadd.f32 0.0, %v135
    %137 = vdwg.mxu0
    %138 = vmatpush.msra.mxu0 0.0
    %139 = vmatpush.msra.mxu0 0.0
    %140 = vmatpush.msra.mxu0 0.0
    %141 = vmatpush.msra.mxu0 0.0
    %142 = vmatpush.msra.mxu0 0.0
    %143 = vmatpush.msra.mxu0 0.0
    %144 = vmatpush.msra.mxu0 0.0
    %145 = vmatpush.msra.mxu0 0.0
    %146 = vmatpush.msra.mxu0 0.0
    %147 = vmatpush.msra.mxu0 0.0
    %148 = vmatpush.msra.mxu0 0.0
    %149 = vmatpush.msra.mxu0 0.0
    %150 = vmatpush.msra.mxu0 0.0
    %151 = vmatpush.msra.mxu0 0.0
    %152 = vmatpush.msra.mxu0 0.0
    %153 = vmatpush.msra.mxu0 %v108
    %154 = vmatmul.f32.gmra.mxu0 %v116
    %v155 = vpop.f32.mrf.mxu0
    %v156 = vadd.f32 0.0, %v155
    %157 = vdwg.mxu0
    %158 = vmatpush.msra.mxu0 0.0
    %159 = vmatpush.msra.mxu0 0.0
    %160 = vmatpush.msra.mxu0 0.0
    %161 = vmatpush.msra.mxu0 0.0
    %162 = vmatpush.msra.mxu0 0.0
    %163 = vmatpush.msra.mxu0 0.0
    %164 = vmatpush.msra.mxu0 0.0
    %165 = vmatpush.msra.mxu0 0.0
    %166 = vmatpush.msra.mxu0 0.0
    %167 = vmatpush.msra.mxu0 0.0
    %168 = vmatpush.msra.mxu0 0.0
    %169 = vmatpush.msra.mxu0 0.0
    %170 = vmatpush.msra.mxu0 0.0
    %171 = vmatpush.msra.mxu0 0.0
    %172 = vmatpush.msra.mxu0 0.0
    %173 = vmatpush.msra.mxu0 %v109
    %174 = vmatmul.f32.gmra.mxu0 %v116
    %v175 = vpop.f32.mrf.mxu0
    %v176 = vadd.f32 0.0, %v175
    %177 = vdwg.mxu0
    %178 = vmatpush.msra.mxu0 0.0
    %179 = vmatpush.msra.mxu0 0.0
    %180 = vmatpush.msra.mxu0 0.0
    %181 = vmatpush.msra.mxu0 0.0
    %182 = vmatpush.msra.mxu0 0.0
    %183 = vmatpush.msra.mxu0 0.0
    %184 = vmatpush.msra.mxu0 0.0
    %185 = vmatpush.msra.mxu0 0.0
    %186 = vmatpush.msra.mxu0 0.0
    %187 = vmatpush.msra.mxu0 0.0
    %188 = vmatpush.msra.mxu0 0.0
    %189 = vmatpush.msra.mxu0 0.0
    %190 = vmatpush.msra.mxu0 0.0
    %191 = vmatpush.msra.mxu0 0.0
    %192 = vmatpush.msra.mxu0 0.0
    %193 = vmatpush.msra.mxu0 %v110
    %194 = vmatmul.f32.gmra.mxu0 %v116
    %v195 = vpop.f32.mrf.mxu0
    %v196 = vadd.f32 0.0, %v195
    %197 = vdwg.mxu0
    %198 = vmatpush.msra.mxu0 0.0
    %199 = vmatpush.msra.mxu0 0.0
    %200 = vmatpush.msra.mxu0 0.0
    %201 = vmatpush.msra.mxu0 0.0
    %202 = vmatpush.msra.mxu0 0.0
    %203 = vmatpush.msra.mxu0 0.0
    %204 = vmatpush.msra.mxu0 0.0
    %205 = vmatpush.msra.mxu0 0.0
    %206 = vmatpush.msra.mxu0 0.0
    %207 = vmatpush.msra.mxu0 0.0
    %208 = vmatpush.msra.mxu0 0.0
    %209 = vmatpush.msra.mxu0 0.0
    %210 = vmatpush.msra.mxu0 0.0
    %211 = vmatpush.msra.mxu0 0.0
    %212 = vmatpush.msra.mxu0 0.0
    %213 = vmatpush.msra.mxu0 %v111
    %214 = vmatmul.f32.gmra.mxu0 %v116
    %v215 = vpop.f32.mrf.mxu0
    %v216 = vadd.f32 0.0, %v215
    %217 = vdwg.mxu0
    %218 = vmatpush.msra.mxu0 0.0
    %219 = vmatpush.msra.mxu0 0.0
    %220 = vmatpush.msra.mxu0 0.0
    %221 = vmatpush.msra.mxu0 0.0
    %222 = vmatpush.msra.mxu0 0.0
    %223 = vmatpush.msra.mxu0 0.0
    %224 = vmatpush.msra.mxu0 0.0
    %225 = vmatpush.msra.mxu0 0.0
    %226 = vmatpush.msra.mxu0 0.0
    %227 = vmatpush.msra.mxu0 0.0
    %228 = vmatpush.msra.mxu0 0.0
    %229 = vmatpush.msra.mxu0 0.0
    %230 = vmatpush.msra.mxu0 0.0
    %231 = vmatpush.msra.mxu0 0.0
    %232 = vmatpush.msra.mxu0 0.0
    %233 = vmatpush.msra.mxu0 %v112
    %234 = vmatmul.f32.gmra.mxu0 %v116
    %v235 = vpop.f32.mrf.mxu0
    %v236 = vadd.f32 0.0, %v235
    %237 = vdwg.mxu0
    %v238 = vld [vmem:[%s4] sm:$0xff]
    %240 = vset.pattern.permute.xlu0 0
    %241 = vperm.xlu0 %240, %v238
    %v242 = vpop.permute.xlu0 %241
    %v244 = vmul.f32 %v136, %v242
    %v245 = vmul.f32 %v156, %v242
    %v246 = vmul.f32 %v176, %v242
    %v247 = vmul.f32 %v196, %v242
    %v248 = vmul.f32 %v216, %v242
    %v249 = vmul.f32 %v236, %v242
    %250 = vset.pattern.permute.xlu0 1
    %251 = vperm.xlu0 %250, %v238
    %v252 = vpop.permute.xlu0 %251
    %v254 = vadd.f32 %v244, %v252
    %v255 = vadd.f32 %v245, %v252
    %v256 = vadd.f32 %v246, %v252
    %v257 = vadd.f32 %v247, %v252
    %v258 = vadd.f32 %v248, %v252
    %v259 = vadd.f32 %v249, %v252
    %v260 = vmax.f32 %v254, 0.0
    %v261 = vmax.f32 %v255, 0.0
    %v262 = vmax.f32 %v256, 0.0
    %v263 = vmax.f32 %v257, 0.0
    %v264 = vmax.f32 %v258, 0.0
    %v265 = vmax.f32 %v259, 0.0
    %v267 = vperm.slane %v84, 0
    %v268 = vperm.slane %v84, 1
    %v269 = vperm.slane %v84, 2
    %v270 = vperm.slane %v84, 3
    %v271 = vperm.slane %v84, 4
    %v272 = vperm.slane %v84, 5
    %v279 = vmul.f32 %v260, %v267
    %v280 = vmul.f32 %v261, %v268
    %v281 = vmul.f32 %v262, %v269
    %v282 = vmul.f32 %v263, %v270
    %v283 = vmul.f32 %v264, %v271
    %v284 = vmul.f32 %v265, %v272
    %285 = vrot.lane.b32.xlu0 %v279, 19
    %v286 = vpop.permute.xlu0 %285
    %287 = vrot.lane.b32.xlu0 %v280, 19
    %v288 = vpop.permute.xlu0 %287
    %289 = vrot.lane.b32.xlu0 %v281, 19
    %v290 = vpop.permute.xlu0 %289
    %291 = vrot.lane.b32.xlu0 %v282, 19
    %v292 = vpop.permute.xlu0 %291
    %293 = vrot.lane.b32.xlu0 %v283, 19
    %v294 = vpop.permute.xlu0 %293
    %295 = vrot.lane.b32.xlu0 %v284, 19
    %v296 = vpop.permute.xlu0 %295
    %v297 = vlaneseq
    %v298 = vand.u32 %v297, 127
    %vm299 = vcmp.lt.s32.totalorder %v298, 19
    %v300 = vsel %vm299, %v294, %v296
    %v301 = vsel %vm299, %v292, %v294
    %v302 = vsel %vm299, %v290, %v292
    %v303 = vsel %vm299, %v288, %v290
    %v304 = vsel %vm299, %v286, %v288
    %v305 = vsel %vm299, %v296, %v286
    %306 = vrot.lane.b32.xlu0 %v279, 18
    %v307 = vpop.permute.xlu0 %306
    %308 = vrot.lane.b32.xlu0 %v280, 18
    %v309 = vpop.permute.xlu0 %308
    %310 = vrot.lane.b32.xlu0 %v281, 18
    %v311 = vpop.permute.xlu0 %310
    %312 = vrot.lane.b32.xlu0 %v282, 18
    %v313 = vpop.permute.xlu0 %312
    %314 = vrot.lane.b32.xlu0 %v283, 18
    %v315 = vpop.permute.xlu0 %314
    %316 = vrot.lane.b32.xlu0 %v284, 18
    %v317 = vpop.permute.xlu0 %316
    %vm318 = vcmp.lt.s32.totalorder %v298, 18
    %v319 = vsel %vm318, %v315, %v317
    %v320 = vsel %vm318, %v313, %v315
    %v321 = vsel %vm318, %v311, %v313
    %v322 = vsel %vm318, %v309, %v311
    %v323 = vsel %vm318, %v307, %v309
    %v324 = vsel %vm318, %v317, %v307
    %325 = vrot.lane.b32.xlu0 %v279, 17
    %v326 = vpop.permute.xlu0 %325
    %327 = vrot.lane.b32.xlu0 %v280, 17
    %v328 = vpop.permute.xlu0 %327
    %329 = vrot.lane.b32.xlu0 %v281, 17
    %v330 = vpop.permute.xlu0 %329
    %331 = vrot.lane.b32.xlu0 %v282, 17
    %v332 = vpop.permute.xlu0 %331
    %333 = vrot.lane.b32.xlu0 %v283, 17
    %v334 = vpop.permute.xlu0 %333
    %335 = vrot.lane.b32.xlu0 %v284, 17
    %v336 = vpop.permute.xlu0 %335
    %vm337 = vcmp.lt.s32.totalorder %v298, 17
    %v338 = vsel %vm337, %v334, %v336
    %v339 = vsel %vm337, %v332, %v334
    %v340 = vsel %vm337, %v330, %v332
    %v341 = vsel %vm337, %v328, %v330
    %v342 = vsel %vm337, %v326, %v328
    %v343 = vsel %vm337, %v336, %v326
    %v344 = vld [vmem:[#allocation5] sm:$0xff]
    %345 = vrot.lane.b32.xlu0 %v279, 1
    %v346 = vpop.permute.xlu0 %345
    %347 = vrot.lane.b32.xlu0 %v280, 1
    %v348 = vpop.permute.xlu0 %347
    %349 = vrot.lane.b32.xlu0 %v281, 1
    %v350 = vpop.permute.xlu0 %349
    %351 = vrot.lane.b32.xlu0 %v282, 1
    %v352 = vpop.permute.xlu0 %351
    %353 = vrot.lane.b32.xlu0 %v283, 1
    %v354 = vpop.permute.xlu0 %353
    %355 = vrot.lane.b32.xlu0 %v284, 1
    %v356 = vpop.permute.xlu0 %355
    %vm357 = vcmp.lt.s32.totalorder %v298, 1
    %v358 = vsel %vm357, %v354, %v356
    %v359 = vsel %vm357, %v352, %v354
    %v360 = vsel %vm357, %v350, %v352
    %v361 = vsel %vm357, %v348, %v350
    %v362 = vsel %vm357, %v346, %v348
    %v363 = vsel %vm357, %v356, %v346
    %364 = vrot.lane.b32.xlu0 %v279, 127
    %v365 = vpop.permute.xlu0 %364
    %366 = vrot.lane.b32.xlu0 %v280, 127
    %v367 = vpop.permute.xlu0 %366
    %368 = vrot.lane.b32.xlu0 %v281, 127
    %v369 = vpop.permute.xlu0 %368
    %370 = vrot.lane.b32.xlu0 %v282, 127
    %v371 = vpop.permute.xlu0 %370
    %372 = vrot.lane.b32.xlu0 %v283, 127
    %v373 = vpop.permute.xlu0 %372
    %374 = vrot.lane.b32.xlu0 %v284, 127
    %v375 = vpop.permute.xlu0 %374
    %vm376 = vcmp.lt.s32.totalorder %v298, 127
    %v377 = vsel %vm376, %v373, %v375
    %v378 = vsel %vm376, %v371, %v373
    %v379 = vsel %vm376, %v369, %v371
    %v380 = vsel %vm376, %v367, %v369
    %v381 = vsel %vm376, %v365, %v367
    %v382 = vsel %vm376, %v375, %v365
    %s383 = scalar_lea.vmem [#allocation5], 8
    %v384 = vld [vmem:[%s383] sm:$0xff]
    %vm385 = vcmask 195584
    %v387 = vsel %vm385, %v384, 0
    %389 = vmatpush.msra.mxu0 0.0
    %390 = vmatpush.msra.mxu0 0.0
    %391 = vmatpush.msra.mxu0 0.0
    %392 = vmatpush.msra.mxu0 0.0
    %393 = vmatpush.msra.mxu0 0.0
    %394 = vmatpush.msra.mxu0 0.0
    %395 = vmatpush.msra.mxu0 0.0
    %396 = vmatpush.msra.mxu0 0.0
    %397 = vmatpush.msra.mxu0 0.0
    %398 = vmatpush.msra.mxu0 0.0
    %399 = vmatpush.msra.mxu0 0.0
    %400 = vmatpush.msra.mxu0 0.0
    %401 = vmatpush.msra.mxu0 0.0
    %402 = vmatpush.msra.mxu0 %v381
    %403 = vmatpush.msra.mxu0 %v279
    %404 = vmatpush.msra.mxu0 %v363
    %405 = vmatmul.f32.gmra.mxu0 %v387
    %v406 = vpop.f32.mrf.mxu0
    %v407 = vadd.f32 0.0, %v406
    %408 = vdwg.mxu0
    %409 = vmatpush.msra.mxu0 0.0
    %410 = vmatpush.msra.mxu0 0.0
    %411 = vmatpush.msra.mxu0 0.0
    %412 = vmatpush.msra.mxu0 0.0
    %413 = vmatpush.msra.mxu0 0.0
    %414 = vmatpush.msra.mxu0 0.0
    %415 = vmatpush.msra.mxu0 0.0
    %416 = vmatpush.msra.mxu0 0.0
    %417 = vmatpush.msra.mxu0 0.0
    %418 = vmatpush.msra.mxu0 0.0
    %419 = vmatpush.msra.mxu0 0.0
    %420 = vmatpush.msra.mxu0 0.0
    %421 = vmatpush.msra.mxu0 0.0
    %422 = vmatpush.msra.mxu0 %v380
    %423 = vmatpush.msra.mxu0 %v280
    %424 = vmatpush.msra.mxu0 %v362
    %425 = vmatmul.f32.gmra.mxu0 %v387
    %v426 = vpop.f32.mrf.mxu0
    %v427 = vadd.f32 0.0, %v426
    %428 = vdwg.mxu0
    %429 = vmatpush.msra.mxu0 0.0
    %430 = vmatpush.msra.mxu0 0.0
    %431 = vmatpush.msra.mxu0 0.0
    %432 = vmatpush.msra.mxu0 0.0
    %433 = vmatpush.msra.mxu0 0.0
    %434 = vmatpush.msra.mxu0 0.0
    %435 = vmatpush.msra.mxu0 0.0
    %436 = vmatpush.msra.mxu0 0.0
    %437 = vmatpush.msra.mxu0 0.0
    %438 = vmatpush.msra.mxu0 0.0
    %439 = vmatpush.msra.mxu0 0.0
    %440 = vmatpush.msra.mxu0 0.0
    %441 = vmatpush.msra.mxu0 0.0
    %442 = vmatpush.msra.mxu0 %v379
    %443 = vmatpush.msra.mxu0 %v281
    %444 = vmatpush.msra.mxu0 %v361
    %445 = vmatmul.f32.gmra.mxu0 %v387
    %v446 = vpop.f32.mrf.mxu0
    %v447 = vadd.f32 0.0, %v446
    %448 = vdwg.mxu0
    %449 = vmatpush.msra.mxu0 0.0
    %450 = vmatpush.msra.mxu0 0.0
    %451 = vmatpush.msra.mxu0 0.0
    %452 = vmatpush.msra.mxu0 0.0
    %453 = vmatpush.msra.mxu0 0.0
    %454 = vmatpush.msra.mxu0 0.0
    %455 = vmatpush.msra.mxu0 0.0
    %456 = vmatpush.msra.mxu0 0.0
    %457 = vmatpush.msra.mxu0 0.0
    %458 = vmatpush.msra.mxu0 0.0
    %459 = vmatpush.msra.mxu0 0.0
    %460 = vmatpush.msra.mxu0 0.0
    %461 = vmatpush.msra.mxu0 0.0
    %462 = vmatpush.msra.mxu0 %v378
    %463 = vmatpush.msra.mxu0 %v282
    %464 = vmatpush.msra.mxu0 %v360
    %465 = vmatmul.f32.gmra.mxu0 %v387
    %v466 = vpop.f32.mrf.mxu0
    %v467 = vadd.f32 0.0, %v466
    %468 = vdwg.mxu0
    %469 = vmatpush.msra.mxu0 0.0
    %470 = vmatpush.msra.mxu0 0.0
    %471 = vmatpush.msra.mxu0 0.0
    %472 = vmatpush.msra.mxu0 0.0
    %473 = vmatpush.msra.mxu0 0.0
    %474 = vmatpush.msra.mxu0 0.0
    %475 = vmatpush.msra.mxu0 0.0
    %476 = vmatpush.msra.mxu0 0.0
    %477 = vmatpush.msra.mxu0 0.0
    %478 = vmatpush.msra.mxu0 0.0
    %479 = vmatpush.msra.mxu0 0.0
    %480 = vmatpush.msra.mxu0 0.0
    %481 = vmatpush.msra.mxu0 0.0
    %482 = vmatpush.msra.mxu0 %v377
    %483 = vmatpush.msra.mxu0 %v283
    %484 = vmatpush.msra.mxu0 %v359
    %485 = vmatmul.f32.gmra.mxu0 %v387
    %v486 = vpop.f32.mrf.mxu0
    %v487 = vadd.f32 0.0, %v486
    %488 = vdwg.mxu0
    %489 = vmatpush.msra.mxu0 0.0
    %490 = vmatpush.msra.mxu0 0.0
    %491 = vmatpush.msra.mxu0 0.0
    %492 = vmatpush.msra.mxu0 0.0
    %493 = vmatpush.msra.mxu0 0.0
    %494 = vmatpush.msra.mxu0 0.0
    %495 = vmatpush.msra.mxu0 0.0
    %496 = vmatpush.msra.mxu0 0.0
    %497 = vmatpush.msra.mxu0 0.0
    %498 = vmatpush.msra.mxu0 0.0
    %499 = vmatpush.msra.mxu0 0.0
    %500 = vmatpush.msra.mxu0 0.0
    %501 = vmatpush.msra.mxu0 0.0
    %502 = vmatpush.msra.mxu0 %v382
    %503 = vmatpush.msra.mxu0 %v284
    %504 = vmatpush.msra.mxu0 %v358
    %505 = vmatmul.f32.gmra.mxu0 %v387
    %v506 = vpop.f32.mrf.mxu0
    %v507 = vadd.f32 0.0, %v506
    %508 = vdwg.mxu0
    %v510 = vsel %vm385, %v344, 0
    %512 = vmatpush.msra.mxu0 0.0
    %513 = vmatpush.msra.mxu0 0.0
    %514 = vmatpush.msra.mxu0 0.0
    %515 = vmatpush.msra.mxu0 0.0
    %516 = vmatpush.msra.mxu0 0.0
    %517 = vmatpush.msra.mxu0 0.0
    %518 = vmatpush.msra.mxu0 0.0
    %519 = vmatpush.msra.mxu0 0.0
    %520 = vmatpush.msra.mxu0 0.0
    %521 = vmatpush.msra.mxu0 0.0
    %522 = vmatpush.msra.mxu0 0.0
    %523 = vmatpush.msra.mxu0 0.0
    %524 = vmatpush.msra.mxu0 0.0
    %525 = vmatpush.msra.mxu0 %v343
    %526 = vmatpush.msra.mxu0 %v324
    %527 = vmatpush.msra.mxu0 %v305
    %528 = vmatmul.f32.gmra.mxu0 %v510
    %v529 = vpop.f32.mrf.mxu0
    %v530 = vadd.f32 %v407, %v529
    %531 = vdwg.mxu0
    %532 = vmatpush.msra.mxu0 0.0
    %533 = vmatpush.msra.mxu0 0.0
    %534 = vmatpush.msra.mxu0 0.0
    %535 = vmatpush.msra.mxu0 0.0
    %536 = vmatpush.msra.mxu0 0.0
    %537 = vmatpush.msra.mxu0 0.0
    %538 = vmatpush.msra.mxu0 0.0
    %539 = vmatpush.msra.mxu0 0.0
    %540 = vmatpush.msra.mxu0 0.0
    %541 = vmatpush.msra.mxu0 0.0
    %542 = vmatpush.msra.mxu0 0.0
    %543 = vmatpush.msra.mxu0 0.0
    %544 = vmatpush.msra.mxu0 0.0
    %545 = vmatpush.msra.mxu0 %v342
    %546 = vmatpush.msra.mxu0 %v323
    %547 = vmatpush.msra.mxu0 %v304
    %548 = vmatmul.f32.gmra.mxu0 %v510
    %v549 = vpop.f32.mrf.mxu0
    %v550 = vadd.f32 %v427, %v549
    %551 = vdwg.mxu0
    %552 = vmatpush.msra.mxu0 0.0
    %553 = vmatpush.msra.mxu0 0.0
    %554 = vmatpush.msra.mxu0 0.0
    %555 = vmatpush.msra.mxu0 0.0
    %556 = vmatpush.msra.mxu0 0.0
    %557 = vmatpush.msra.mxu0 0.0
    %558 = vmatpush.msra.mxu0 0.0
    %559 = vmatpush.msra.mxu0 0.0
    %560 = vmatpush.msra.mxu0 0.0
    %561 = vmatpush.msra.mxu0 0.0
    %562 = vmatpush.msra.mxu0 0.0
    %563 = vmatpush.msra.mxu0 0.0
    %564 = vmatpush.msra.mxu0 0.0
    %565 = vmatpush.msra.mxu0 %v341
    %566 = vmatpush.msra.mxu0 %v322
    %567 = vmatpush.msra.mxu0 %v303
    %568 = vmatmul.f32.gmra.mxu0 %v510
    %v569 = vpop.f32.mrf.mxu0
    %v570 = vadd.f32 %v447, %v569
    %571 = vdwg.mxu0
    %572 = vmatpush.msra.mxu0 0.0
    %573 = vmatpush.msra.mxu0 0.0
    %574 = vmatpush.msra.mxu0 0.0
    %575 = vmatpush.msra.mxu0 0.0
    %576 = vmatpush.msra.mxu0 0.0
    %577 = vmatpush.msra.mxu0 0.0
    %578 = vmatpush.msra.mxu0 0.0
    %579 = vmatpush.msra.mxu0 0.0
    %580 = vmatpush.msra.mxu0 0.0
    %581 = vmatpush.msra.mxu0 0.0
    %582 = vmatpush.msra.mxu0 0.0
    %583 = vmatpush.msra.mxu0 0.0
    %584 = vmatpush.msra.mxu0 0.0
    %585 = vmatpush.msra.mxu0 %v340
    %586 = vmatpush.msra.mxu0 %v321
    %587 = vmatpush.msra.mxu0 %v302
    %588 = vmatmul.f32.gmra.mxu0 %v510
    %v589 = vpop.f32.mrf.mxu0
    %v590 = vadd.f32 %v467, %v589
    %591 = vdwg.mxu0
    %592 = vmatpush.msra.mxu0 0.0
    %593 = vmatpush.msra.mxu0 0.0
    %594 = vmatpush.msra.mxu0 0.0
    %595 = vmatpush.msra.mxu0 0.0
    %596 = vmatpush.msra.mxu0 0.0
    %597 = vmatpush.msra.mxu0 0.0
    %598 = vmatpush.msra.mxu0 0.0
    %599 = vmatpush.msra.mxu0 0.0
    %600 = vmatpush.msra.mxu0 0.0
    %601 = vmatpush.msra.mxu0 0.0
    %602 = vmatpush.msra.mxu0 0.0
    %603 = vmatpush.msra.mxu0 0.0
    %604 = vmatpush.msra.mxu0 0.0
    %605 = vmatpush.msra.mxu0 %v339
    %606 = vmatpush.msra.mxu0 %v320
    %607 = vmatpush.msra.mxu0 %v301
    %608 = vmatmul.f32.gmra.mxu0 %v510
    %v609 = vpop.f32.mrf.mxu0
    %v610 = vadd.f32 %v487, %v609
    %611 = vdwg.mxu0
    %612 = vmatpush.msra.mxu0 0.0
    %613 = vmatpush.msra.mxu0 0.0
    %614 = vmatpush.msra.mxu0 0.0
    %615 = vmatpush.msra.mxu0 0.0
    %616 = vmatpush.msra.mxu0 0.0
    %617 = vmatpush.msra.mxu0 0.0
    %618 = vmatpush.msra.mxu0 0.0
    %619 = vmatpush.msra.mxu0 0.0
    %620 = vmatpush.msra.mxu0 0.0
    %621 = vmatpush.msra.mxu0 0.0
    %622 = vmatpush.msra.mxu0 0.0
    %623 = vmatpush.msra.mxu0 0.0
    %624 = vmatpush.msra.mxu0 0.0
    %625 = vmatpush.msra.mxu0 %v338
    %626 = vmatpush.msra.mxu0 %v319
    %627 = vmatpush.msra.mxu0 %v300
    %628 = vmatmul.f32.gmra.mxu0 %v510
    %v629 = vpop.f32.mrf.mxu0
    %v630 = vadd.f32 %v507, %v629
    %631 = vdwg.mxu0
    %632 = vrot.lane.b32.xlu0 %v279, 111
    %v633 = vpop.permute.xlu0 %632
    %634 = vrot.lane.b32.xlu0 %v280, 111
    %v635 = vpop.permute.xlu0 %634
    %636 = vrot.lane.b32.xlu0 %v281, 111
    %v637 = vpop.permute.xlu0 %636
    %638 = vrot.lane.b32.xlu0 %v282, 111
    %v639 = vpop.permute.xlu0 %638
    %640 = vrot.lane.b32.xlu0 %v283, 111
    %v641 = vpop.permute.xlu0 %640
    %642 = vrot.lane.b32.xlu0 %v284, 111
    %v643 = vpop.permute.xlu0 %642
    %vm644 = vcmp.lt.s32.totalorder %v298, 111
    %v645 = vsel %vm644, %v641, %v643
    %v646 = vsel %vm644, %v639, %v641
    %v647 = vsel %vm644, %v637, %v639
    %v648 = vsel %vm644, %v635, %v637
    %v649 = vsel %vm644, %v633, %v635
    %v650 = vsel %vm644, %v643, %v633
    %651 = vrot.lane.b32.xlu0 %v279, 110
    %v652 = vpop.permute.xlu0 %651
    %653 = vrot.lane.b32.xlu0 %v280, 110
    %v654 = vpop.permute.xlu0 %653
    %655 = vrot.lane.b32.xlu0 %v281, 110
    %v656 = vpop.permute.xlu0 %655
    %657 = vrot.lane.b32.xlu0 %v282, 110
    %v658 = vpop.permute.xlu0 %657
    %659 = vrot.lane.b32.xlu0 %v283, 110
    %v660 = vpop.permute.xlu0 %659
    %661 = vrot.lane.b32.xlu0 %v284, 110
    %v662 = vpop.permute.xlu0 %661
    %vm663 = vcmp.lt.s32.totalorder %v298, 110
    %v664 = vsel %vm663, %v660, %v662
    %v665 = vsel %vm663, %v658, %v660
    %v666 = vsel %vm663, %v656, %v658
    %v667 = vsel %vm663, %v654, %v656
    %v668 = vsel %vm663, %v652, %v654
    %v669 = vsel %vm663, %v662, %v652
    %670 = vrot.lane.b32.xlu0 %v279, 109
    %v671 = vpop.permute.xlu0 %670
    %672 = vrot.lane.b32.xlu0 %v280, 109
    %v673 = vpop.permute.xlu0 %672
    %674 = vrot.lane.b32.xlu0 %v281, 109
    %v675 = vpop.permute.xlu0 %674
    %676 = vrot.lane.b32.xlu0 %v282, 109
    %v677 = vpop.permute.xlu0 %676
    %678 = vrot.lane.b32.xlu0 %v283, 109
    %v679 = vpop.permute.xlu0 %678
    %680 = vrot.lane.b32.xlu0 %v284, 109
    %v681 = vpop.permute.xlu0 %680
    %vm682 = vcmp.lt.s32.totalorder %v298, 109
    %v683 = vsel %vm682, %v679, %v681
    %v684 = vsel %vm682, %v677, %v679
    %v685 = vsel %vm682, %v675, %v677
    %v686 = vsel %vm682, %v673, %v675
    %v687 = vsel %vm682, %v671, %v673
    %v688 = vsel %vm682, %v681, %v671
    %s689 = scalar_lea.vmem [#allocation5], 16
    %v690 = vld [vmem:[%s689] sm:$0xff]
    %v692 = vsel %vm385, %v690, 0
    %694 = vmatpush.msra.mxu0 0.0
    %695 = vmatpush.msra.mxu0 0.0
    %696 = vmatpush.msra.mxu0 0.0
    %697 = vmatpush.msra.mxu0 0.0
    %698 = vmatpush.msra.mxu0 0.0
    %699 = vmatpush.msra.mxu0 0.0
    %700 = vmatpush.msra.mxu0 0.0
    %701 = vmatpush.msra.mxu0 0.0
    %702 = vmatpush.msra.mxu0 0.0
    %703 = vmatpush.msra.mxu0 0.0
    %704 = vmatpush.msra.mxu0 0.0
    %705 = vmatpush.msra.mxu0 0.0
    %706 = vmatpush.msra.mxu0 0.0
    %707 = vmatpush.msra.mxu0 %v687
    %708 = vmatpush.msra.mxu0 %v668
    %709 = vmatpush.msra.mxu0 %v649
    %710 = vmatmul.f32.gmra.mxu0 %v692
    %v711 = vpop.f32.mrf.mxu0
    %v712 = vadd.f32 0.0, %v711
    %713 = vdwg.mxu0
    %714 = vmatpush.msra.mxu0 0.0
    %715 = vmatpush.msra.mxu0 0.0
    %716 = vmatpush.msra.mxu0 0.0
    %717 = vmatpush.msra.mxu0 0.0
    %718 = vmatpush.msra.mxu0 0.0
    %719 = vmatpush.msra.mxu0 0.0
    %720 = vmatpush.msra.mxu0 0.0
    %721 = vmatpush.msra.mxu0 0.0
    %722 = vmatpush.msra.mxu0 0.0
    %723 = vmatpush.msra.mxu0 0.0
    %724 = vmatpush.msra.mxu0 0.0
    %725 = vmatpush.msra.mxu0 0.0
    %726 = vmatpush.msra.mxu0 0.0
    %727 = vmatpush.msra.mxu0 %v686
    %728 = vmatpush.msra.mxu0 %v667
    %729 = vmatpush.msra.mxu0 %v648
    %730 = vmatmul.f32.gmra.mxu0 %v692
    %v731 = vpop.f32.mrf.mxu0
    %v732 = vadd.f32 0.0, %v731
    %733 = vdwg.mxu0
    %734 = vmatpush.msra.mxu0 0.0
    %735 = vmatpush.msra.mxu0 0.0
    %736 = vmatpush.msra.mxu0 0.0
    %737 = vmatpush.msra.mxu0 0.0
    %738 = vmatpush.msra.mxu0 0.0
    %739 = vmatpush.msra.mxu0 0.0
    %740 = vmatpush.msra.mxu0 0.0
    %741 = vmatpush.msra.mxu0 0.0
    %742 = vmatpush.msra.mxu0 0.0
    %743 = vmatpush.msra.mxu0 0.0
    %744 = vmatpush.msra.mxu0 0.0
    %745 = vmatpush.msra.mxu0 0.0
    %746 = vmatpush.msra.mxu0 0.0
    %747 = vmatpush.msra.mxu0 %v685
    %748 = vmatpush.msra.mxu0 %v666
    %749 = vmatpush.msra.mxu0 %v647
    %750 = vmatmul.f32.gmra.mxu0 %v692
    %v751 = vpop.f32.mrf.mxu0
    %v752 = vadd.f32 0.0, %v751
    %753 = vdwg.mxu0
    %754 = vmatpush.msra.mxu0 0.0
    %755 = vmatpush.msra.mxu0 0.0
    %756 = vmatpush.msra.mxu0 0.0
    %757 = vmatpush.msra.mxu0 0.0
    %758 = vmatpush.msra.mxu0 0.0
    %759 = vmatpush.msra.mxu0 0.0
    %760 = vmatpush.msra.mxu0 0.0
    %761 = vmatpush.msra.mxu0 0.0
    %762 = vmatpush.msra.mxu0 0.0
    %763 = vmatpush.msra.mxu0 0.0
    %764 = vmatpush.msra.mxu0 0.0
    %765 = vmatpush.msra.mxu0 0.0
    %766 = vmatpush.msra.mxu0 0.0
    %767 = vmatpush.msra.mxu0 %v684
    %768 = vmatpush.msra.mxu0 %v665
    %769 = vmatpush.msra.mxu0 %v646
    %770 = vmatmul.f32.gmra.mxu0 %v692
    %v771 = vpop.f32.mrf.mxu0
    %v772 = vadd.f32 0.0, %v771
    %773 = vdwg.mxu0
    %774 = vmatpush.msra.mxu0 0.0
    %775 = vmatpush.msra.mxu0 0.0
    %776 = vmatpush.msra.mxu0 0.0
    %777 = vmatpush.msra.mxu0 0.0
    %778 = vmatpush.msra.mxu0 0.0
    %779 = vmatpush.msra.mxu0 0.0
    %780 = vmatpush.msra.mxu0 0.0
    %781 = vmatpush.msra.mxu0 0.0
    %782 = vmatpush.msra.mxu0 0.0
    %783 = vmatpush.msra.mxu0 0.0
    %784 = vmatpush.msra.mxu0 0.0
    %785 = vmatpush.msra.mxu0 0.0
    %786 = vmatpush.msra.mxu0 0.0
    %787 = vmatpush.msra.mxu0 %v683
    %788 = vmatpush.msra.mxu0 %v664
    %789 = vmatpush.msra.mxu0 %v645
    %790 = vmatmul.f32.gmra.mxu0 %v692
    %v791 = vpop.f32.mrf.mxu0
    %v792 = vadd.f32 0.0, %v791
    %793 = vdwg.mxu0
    %794 = vmatpush.msra.mxu0 0.0
    %795 = vmatpush.msra.mxu0 0.0
    %796 = vmatpush.msra.mxu0 0.0
    %797 = vmatpush.msra.mxu0 0.0
    %798 = vmatpush.msra.mxu0 0.0
    %799 = vmatpush.msra.mxu0 0.0
    %800 = vmatpush.msra.mxu0 0.0
    %801 = vmatpush.msra.mxu0 0.0
    %802 = vmatpush.msra.mxu0 0.0
    %803 = vmatpush.msra.mxu0 0.0
    %804 = vmatpush.msra.mxu0 0.0
    %805 = vmatpush.msra.mxu0 0.0
    %806 = vmatpush.msra.mxu0 0.0
    %807 = vmatpush.msra.mxu0 %v688
    %808 = vmatpush.msra.mxu0 %v669
    %809 = vmatpush.msra.mxu0 %v650
    %810 = vmatmul.f32.gmra.mxu0 %v692
    %v811 = vpop.f32.mrf.mxu0
    %v812 = vadd.f32 0.0, %v811
    %813 = vdwg.mxu0
    %v814 = vadd.f32 %v530, %v712
    %v815 = vadd.f32 %v550, %v732
    %v816 = vadd.f32 %v570, %v752
    %v817 = vadd.f32 %v590, %v772
    %v818 = vadd.f32 %v610, %v792
    %v819 = vadd.f32 %v630, %v812
    %v820 = vld [vmem:[%s6] sm:$0xff]
    %822 = vset.pattern.permute.xlu0 0
    %823 = vperm.xlu0 %822, %v820
    %v824 = vpop.permute.xlu0 %823
    %v826 = vmul.f32 %v814, %v824
    %v827 = vmul.f32 %v815, %v824
    %v828 = vmul.f32 %v816, %v824
    %v829 = vmul.f32 %v817, %v824
    %v830 = vmul.f32 %v818, %v824
    %v831 = vmul.f32 %v819, %v824
    %832 = vset.pattern.permute.xlu0 1
    %833 = vperm.xlu0 %832, %v820
    %v834 = vpop.permute.xlu0 %833
    %v836 = vadd.f32 %v826, %v834
    %v837 = vadd.f32 %v827, %v834
    %v838 = vadd.f32 %v828, %v834
    %v839 = vadd.f32 %v829, %v834
    %v840 = vadd.f32 %v830, %v834
    %v841 = vadd.f32 %v831, %v834
    %v842 = vmax.f32 %v836, 0.0
    %v843 = vmax.f32 %v837, 0.0
    %v844 = vmax.f32 %v838, 0.0
    %v845 = vmax.f32 %v839, 0.0
    %v846 = vmax.f32 %v840, 0.0
    %v847 = vmax.f32 %v841, 0.0
    %v848 = vmul.f32 %v842, %v267
    %v849 = vmul.f32 %v843, %v268
    %v850 = vmul.f32 %v844, %v269
    %v851 = vmul.f32 %v845, %v270
    %v852 = vmul.f32 %v846, %v271
    %v853 = vmul.f32 %v847, %v272
    %854 = vrot.lane.b32.xlu0 %v848, 19
    %v855 = vpop.permute.xlu0 %854
    %856 = vrot.lane.b32.xlu0 %v849, 19
    %v857 = vpop.permute.xlu0 %856
    %858 = vrot.lane.b32.xlu0 %v850, 19
    %v859 = vpop.permute.xlu0 %858
    %860 = vrot.lane.b32.xlu0 %v851, 19
    %v861 = vpop.permute.xlu0 %860
    %862 = vrot.lane.b32.xlu0 %v852, 19
    %v863 = vpop.permute.xlu0 %862
    %864 = vrot.lane.b32.xlu0 %v853, 19
    %v865 = vpop.permute.xlu0 %864
    %v866 = vsel %vm299, %v863, %v865
    %v867 = vsel %vm299, %v861, %v863
    %v868 = vsel %vm299, %v859, %v861
    %v869 = vsel %vm299, %v857, %v859
    %v870 = vsel %vm299, %v855, %v857
    %v871 = vsel %vm299, %v865, %v855
    %872 = vrot.lane.b32.xlu0 %v848, 18
    %v873 = vpop.permute.xlu0 %872
    %874 = vrot.lane.b32.xlu0 %v849, 18
    %v875 = vpop.permute.xlu0 %874
    %876 = vrot.lane.b32.xlu0 %v850, 18
    %v877 = vpop.permute.xlu0 %876
    %878 = vrot.lane.b32.xlu0 %v851, 18
    %v879 = vpop.permute.xlu0 %878
    %880 = vrot.lane.b32.xlu0 %v852, 18
    %v881 = vpop.permute.xlu0 %880
    %882 = vrot.lane.b32.xlu0 %v853, 18
    %v883 = vpop.permute.xlu0 %882
    %v884 = vsel %vm318, %v881, %v883
    %v885 = vsel %vm318, %v879, %v881
    %v886 = vsel %vm318, %v877, %v879
    %v887 = vsel %vm318, %v875, %v877
    %v888 = vsel %vm318, %v873, %v875
    %v889 = vsel %vm318, %v883, %v873
    %890 = vrot.lane.b32.xlu0 %v848, 17
    %v891 = vpop.permute.xlu0 %890
    %892 = vrot.lane.b32.xlu0 %v849, 17
    %v893 = vpop.permute.xlu0 %892
    %894 = vrot.lane.b32.xlu0 %v850, 17
    %v895 = vpop.permute.xlu0 %894
    %896 = vrot.lane.b32.xlu0 %v851, 17
    %v897 = vpop.permute.xlu0 %896
    %898 = vrot.lane.b32.xlu0 %v852, 17
    %v899 = vpop.permute.xlu0 %898
    %900 = vrot.lane.b32.xlu0 %v853, 17
    %v901 = vpop.permute.xlu0 %900
    %v902 = vsel %vm337, %v899, %v901
    %v903 = vsel %vm337, %v897, %v899
    %v904 = vsel %vm337, %v895, %v897
    %v905 = vsel %vm337, %v893, %v895
    %v906 = vsel %vm337, %v891, %v893
    %v907 = vsel %vm337, %v901, %v891
    %v908 = vld [vmem:[#allocation7] sm:$0xff]
    %909 = vrot.lane.b32.xlu0 %v848, 1
    %v910 = vpop.permute.xlu0 %909
    %911 = vrot.lane.b32.xlu0 %v849, 1
    %v912 = vpop.permute.xlu0 %911
    %913 = vrot.lane.b32.xlu0 %v850, 1
    %v914 = vpop.permute.xlu0 %913
    %915 = vrot.lane.b32.xlu0 %v851, 1
    %v916 = vpop.permute.xlu0 %915
    %917 = vrot.lane.b32.xlu0 %v852, 1
    %v918 = vpop.permute.xlu0 %917
    %919 = vrot.lane.b32.xlu0 %v853, 1
    %v920 = vpop.permute.xlu0 %919
    %v921 = vsel %vm357, %v918, %v920
    %v922 = vsel %vm357, %v916, %v918
    %v923 = vsel %vm357, %v914, %v916
    %v924 = vsel %vm357, %v912, %v914
    %v925 = vsel %vm357, %v910, %v912
    %v926 = vsel %vm357, %v920, %v910
    %927 = vrot.lane.b32.xlu0 %v848, 127
    %v928 = vpop.permute.xlu0 %927
    %929 = vrot.lane.b32.xlu0 %v849, 127
    %v930 = vpop.permute.xlu0 %929
    %931 = vrot.lane.b32.xlu0 %v850, 127
    %v932 = vpop.permute.xlu0 %931
    %933 = vrot.lane.b32.xlu0 %v851, 127
    %v934 = vpop.permute.xlu0 %933
    %935 = vrot.lane.b32.xlu0 %v852, 127
    %v936 = vpop.permute.xlu0 %935
    %937 = vrot.lane.b32.xlu0 %v853, 127
    %v938 = vpop.permute.xlu0 %937
    %v939 = vsel %vm376, %v936, %v938
    %v940 = vsel %vm376, %v934, %v936
    %v941 = vsel %vm376, %v932, %v934
    %v942 = vsel %vm376, %v930, %v932
    %v943 = vsel %vm376, %v928, %v930
    %v944 = vsel %vm376, %v938, %v928
    %s945 = scalar_lea.vmem [#allocation7], 8
    %v946 = vld [vmem:[%s945] sm:$0xff]
    %v948 = vsel %vm385, %v946, 0
    %950 = vmatpush.msra.mxu0 0.0
    %951 = vmatpush.msra.mxu0 0.0
    %952 = vmatpush.msra.mxu0 0.0
    %953 = vmatpush.msra.mxu0 0.0
    %954 = vmatpush.msra.mxu0 0.0
    %955 = vmatpush.msra.mxu0 0.0
    %956 = vmatpush.msra.mxu0 0.0
    %957 = vmatpush.msra.mxu0 0.0
    %958 = vmatpush.msra.mxu0 0.0
    %959 = vmatpush.msra.mxu0 0.0
    %960 = vmatpush.msra.mxu0 0.0
    %961 = vmatpush.msra.mxu0 0.0
    %962 = vmatpush.msra.mxu0 0.0
    %963 = vmatpush.msra.mxu0 %v943
    %964 = vmatpush.msra.mxu0 %v848
    %965 = vmatpush.msra.mxu0 %v926
    %966 = vmatmul.f32.gmra.mxu0 %v948
    %v967 = vpop.f32.mrf.mxu0
    %v968 = vadd.f32 0.0, %v967
    %969 = vdwg.mxu0
    %970 = vmatpush.msra.mxu0 0.0
    %971 = vmatpush.msra.mxu0 0.0
    %972 = vmatpush.msra.mxu0 0.0
    %973 = vmatpush.msra.mxu0 0.0
    %974 = vmatpush.msra.mxu0 0.0
    %975 = vmatpush.msra.mxu0 0.0
    %976 = vmatpush.msra.mxu0 0.0
    %977 = vmatpush.msra.mxu0 0.0
    %978 = vmatpush.msra.mxu0 0.0
    %979 = vmatpush.msra.mxu0 0.0
    %980 = vmatpush.msra.mxu0 0.0
    %981 = vmatpush.msra.mxu0 0.0
    %982 = vmatpush.msra.mxu0 0.0
    %983 = vmatpush.msra.mxu0 %v942
    %984 = vmatpush.msra.mxu0 %v849
    %985 = vmatpush.msra.mxu0 %v925
    %986 = vmatmul.f32.gmra.mxu0 %v948
    %v987 = vpop.f32.mrf.mxu0
    %v988 = vadd.f32 0.0, %v987
    %989 = vdwg.mxu0
    %990 = vmatpush.msra.mxu0 0.0
    %991 = vmatpush.msra.mxu0 0.0
    %992 = vmatpush.msra.mxu0 0.0
    %993 = vmatpush.msra.mxu0 0.0
    %994 = vmatpush.msra.mxu0 0.0
    %995 = vmatpush.msra.mxu0 0.0
    %996 = vmatpush.msra.mxu0 0.0
    %997 = vmatpush.msra.mxu0 0.0
    %998 = vmatpush.msra.mxu0 0.0
    %999 = vmatpush.msra.mxu0 0.0
    %1000 = vmatpush.msra.mxu0 0.0
    %1001 = vmatpush.msra.mxu0 0.0
    %1002 = vmatpush.msra.mxu0 0.0
    %1003 = vmatpush.msra.mxu0 %v941
    %1004 = vmatpush.msra.mxu0 %v850
    %1005 = vmatpush.msra.mxu0 %v924
    %1006 = vmatmul.f32.gmra.mxu0 %v948
    %v1007 = vpop.f32.mrf.mxu0
    %v1008 = vadd.f32 0.0, %v1007
    %1009 = vdwg.mxu0
    %1010 = vmatpush.msra.mxu0 0.0
    %1011 = vmatpush.msra.mxu0 0.0
    %1012 = vmatpush.msra.mxu0 0.0
    %1013 = vmatpush.msra.mxu0 0.0
    %1014 = vmatpush.msra.mxu0 0.0
    %1015 = vmatpush.msra.mxu0 0.0
    %1016 = vmatpush.msra.mxu0 0.0
    %1017 = vmatpush.msra.mxu0 0.0
    %1018 = vmatpush.msra.mxu0 0.0
    %1019 = vmatpush.msra.mxu0 0.0
    %1020 = vmatpush.msra.mxu0 0.0
    %1021 = vmatpush.msra.mxu0 0.0
    %1022 = vmatpush.msra.mxu0 0.0
    %1023 = vmatpush.msra.mxu0 %v940
    %1024 = vmatpush.msra.mxu0 %v851
    %1025 = vmatpush.msra.mxu0 %v923
    %1026 = vmatmul.f32.gmra.mxu0 %v948
    %v1027 = vpop.f32.mrf.mxu0
    %v1028 = vadd.f32 0.0, %v1027
    %1029 = vdwg.mxu0
    %1030 = vmatpush.msra.mxu0 0.0
    %1031 = vmatpush.msra.mxu0 0.0
    %1032 = vmatpush.msra.mxu0 0.0
    %1033 = vmatpush.msra.mxu0 0.0
    %1034 = vmatpush.msra.mxu0 0.0
    %1035 = vmatpush.msra.mxu0 0.0
    %1036 = vmatpush.msra.mxu0 0.0
    %1037 = vmatpush.msra.mxu0 0.0
    %1038 = vmatpush.msra.mxu0 0.0
    %1039 = vmatpush.msra.mxu0 0.0
    %1040 = vmatpush.msra.mxu0 0.0
    %1041 = vmatpush.msra.mxu0 0.0
    %1042 = vmatpush.msra.mxu0 0.0
    %1043 = vmatpush.msra.mxu0 %v939
    %1044 = vmatpush.msra.mxu0 %v852
    %1045 = vmatpush.msra.mxu0 %v922
    %1046 = vmatmul.f32.gmra.mxu0 %v948
    %v1047 = vpop.f32.mrf.mxu0
    %v1048 = vadd.f32 0.0, %v1047
    %1049 = vdwg.mxu0
    %1050 = vmatpush.msra.mxu0 0.0
    %1051 = vmatpush.msra.mxu0 0.0
    %1052 = vmatpush.msra.mxu0 0.0
    %1053 = vmatpush.msra.mxu0 0.0
    %1054 = vmatpush.msra.mxu0 0.0
    %1055 = vmatpush.msra.mxu0 0.0
    %1056 = vmatpush.msra.mxu0 0.0
    %1057 = vmatpush.msra.mxu0 0.0
    %1058 = vmatpush.msra.mxu0 0.0
    %1059 = vmatpush.msra.mxu0 0.0
    %1060 = vmatpush.msra.mxu0 0.0
    %1061 = vmatpush.msra.mxu0 0.0
    %1062 = vmatpush.msra.mxu0 0.0
    %1063 = vmatpush.msra.mxu0 %v944
    %1064 = vmatpush.msra.mxu0 %v853
    %1065 = vmatpush.msra.mxu0 %v921
    %1066 = vmatmul.f32.gmra.mxu0 %v948
    %v1067 = vpop.f32.mrf.mxu0
    %v1068 = vadd.f32 0.0, %v1067
    %1069 = vdwg.mxu0
    %v1071 = vsel %vm385, %v908, 0
    %1073 = vmatpush.msra.mxu0 0.0
    %1074 = vmatpush.msra.mxu0 0.0
    %1075 = vmatpush.msra.mxu0 0.0
    %1076 = vmatpush.msra.mxu0 0.0
    %1077 = vmatpush.msra.mxu0 0.0
    %1078 = vmatpush.msra.mxu0 0.0
    %1079 = vmatpush.msra.mxu0 0.0
    %1080 = vmatpush.msra.mxu0 0.0
    %1081 = vmatpush.msra.mxu0 0.0
    %1082 = vmatpush.msra.mxu0 0.0
    %1083 = vmatpush.msra.mxu0 0.0
    %1084 = vmatpush.msra.mxu0 0.0
    %1085 = vmatpush.msra.mxu0 0.0
    %1086 = vmatpush.msra.mxu0 %v907
    %1087 = vmatpush.msra.mxu0 %v889
    %1088 = vmatpush.msra.mxu0 %v871
    %1089 = vmatmul.f32.gmra.mxu0 %v1071
    %v1090 = vpop.f32.mrf.mxu0
    %v1091 = vadd.f32 %v968, %v1090
    %1092 = vdwg.mxu0
    %1093 = vmatpush.msra.mxu0 0.0
    %1094 = vmatpush.msra.mxu0 0.0
    %1095 = vmatpush.msra.mxu0 0.0
    %1096 = vmatpush.msra.mxu0 0.0
    %1097 = vmatpush.msra.mxu0 0.0
    %1098 = vmatpush.msra.mxu0 0.0
    %1099 = vmatpush.msra.mxu0 0.0
    %1100 = vmatpush.msra.mxu0 0.0
    %1101 = vmatpush.msra.mxu0 0.0
    %1102 = vmatpush.msra.mxu0 0.0
    %1103 = vmatpush.msra.mxu0 0.0
    %1104 = vmatpush.msra.mxu0 0.0
    %1105 = vmatpush.msra.mxu0 0.0
    %1106 = vmatpush.msra.mxu0 %v906
    %1107 = vmatpush.msra.mxu0 %v888
    %1108 = vmatpush.msra.mxu0 %v870
    %1109 = vmatmul.f32.gmra.mxu0 %v1071
    %v1110 = vpop.f32.mrf.mxu0
    %v1111 = vadd.f32 %v988, %v1110
    %1112 = vdwg.mxu0
    %1113 = vmatpush.msra.mxu0 0.0
    %1114 = vmatpush.msra.mxu0 0.0
    %1115 = vmatpush.msra.mxu0 0.0
    %1116 = vmatpush.msra.mxu0 0.0
    %1117 = vmatpush.msra.mxu0 0.0
    %1118 = vmatpush.msra.mxu0 0.0
    %1119 = vmatpush.msra.mxu0 0.0
    %1120 = vmatpush.msra.mxu0 0.0
    %1121 = vmatpush.msra.mxu0 0.0
    %1122 = vmatpush.msra.mxu0 0.0
    %1123 = vmatpush.msra.mxu0 0.0
    %1124 = vmatpush.msra.mxu0 0.0
    %1125 = vmatpush.msra.mxu0 0.0
    %1126 = vmatpush.msra.mxu0 %v905
    %1127 = vmatpush.msra.mxu0 %v887
    %1128 = vmatpush.msra.mxu0 %v869
    %1129 = vmatmul.f32.gmra.mxu0 %v1071
    %v1130 = vpop.f32.mrf.mxu0
    %v1131 = vadd.f32 %v1008, %v1130
    %1132 = vdwg.mxu0
    %1133 = vmatpush.msra.mxu0 0.0
    %1134 = vmatpush.msra.mxu0 0.0
    %1135 = vmatpush.msra.mxu0 0.0
    %1136 = vmatpush.msra.mxu0 0.0
    %1137 = vmatpush.msra.mxu0 0.0
    %1138 = vmatpush.msra.mxu0 0.0
    %1139 = vmatpush.msra.mxu0 0.0
    %1140 = vmatpush.msra.mxu0 0.0
    %1141 = vmatpush.msra.mxu0 0.0
    %1142 = vmatpush.msra.mxu0 0.0
    %1143 = vmatpush.msra.mxu0 0.0
    %1144 = vmatpush.msra.mxu0 0.0
    %1145 = vmatpush.msra.mxu0 0.0
    %1146 = vmatpush.msra.mxu0 %v904
    %1147 = vmatpush.msra.mxu0 %v886
    %1148 = vmatpush.msra.mxu0 %v868
    %1149 = vmatmul.f32.gmra.mxu0 %v1071
    %v1150 = vpop.f32.mrf.mxu0
    %v1151 = vadd.f32 %v1028, %v1150
    %1152 = vdwg.mxu0
    %1153 = vmatpush.msra.mxu0 0.0
    %1154 = vmatpush.msra.mxu0 0.0
    %1155 = vmatpush.msra.mxu0 0.0
    %1156 = vmatpush.msra.mxu0 0.0
    %1157 = vmatpush.msra.mxu0 0.0
    %1158 = vmatpush.msra.mxu0 0.0
    %1159 = vmatpush.msra.mxu0 0.0
    %1160 = vmatpush.msra.mxu0 0.0
    %1161 = vmatpush.msra.mxu0 0.0
    %1162 = vmatpush.msra.mxu0 0.0
    %1163 = vmatpush.msra.mxu0 0.0
    %1164 = vmatpush.msra.mxu0 0.0
    %1165 = vmatpush.msra.mxu0 0.0
    %1166 = vmatpush.msra.mxu0 %v903
    %1167 = vmatpush.msra.mxu0 %v885
    %1168 = vmatpush.msra.mxu0 %v867
    %1169 = vmatmul.f32.gmra.mxu0 %v1071
    %v1170 = vpop.f32.mrf.mxu0
    %v1171 = vadd.f32 %v1048, %v1170
    %1172 = vdwg.mxu0
    %1173 = vmatpush.msra.mxu0 0.0
    %1174 = vmatpush.msra.mxu0 0.0
    %1175 = vmatpush.msra.mxu0 0.0
    %1176 = vmatpush.msra.mxu0 0.0
    %1177 = vmatpush.msra.mxu0 0.0
    %1178 = vmatpush.msra.mxu0 0.0
    %1179 = vmatpush.msra.mxu0 0.0
    %1180 = vmatpush.msra.mxu0 0.0
    %1181 = vmatpush.msra.mxu0 0.0
    %1182 = vmatpush.msra.mxu0 0.0
    %1183 = vmatpush.msra.mxu0 0.0
    %1184 = vmatpush.msra.mxu0 0.0
    %1185 = vmatpush.msra.mxu0 0.0
    %1186 = vmatpush.msra.mxu0 %v902
    %1187 = vmatpush.msra.mxu0 %v884
    %1188 = vmatpush.msra.mxu0 %v866
    %1189 = vmatmul.f32.gmra.mxu0 %v1071
    %v1190 = vpop.f32.mrf.mxu0
    %v1191 = vadd.f32 %v1068, %v1190
    %1192 = vdwg.mxu0
    %1193 = vrot.lane.b32.xlu0 %v848, 111
    %v1194 = vpop.permute.xlu0 %1193
    %1195 = vrot.lane.b32.xlu0 %v849, 111
    %v1196 = vpop.permute.xlu0 %1195
    %1197 = vrot.lane.b32.xlu0 %v850, 111
    %v1198 = vpop.permute.xlu0 %1197
    %1199 = vrot.lane.b32.xlu0 %v851, 111
    %v1200 = vpop.permute.xlu0 %1199
    %1201 = vrot.lane.b32.xlu0 %v852, 111
    %v1202 = vpop.permute.xlu0 %1201
    %1203 = vrot.lane.b32.xlu0 %v853, 111
    %v1204 = vpop.permute.xlu0 %1203
    %v1205 = vsel %vm644, %v1202, %v1204
    %v1206 = vsel %vm644, %v1200, %v1202
    %v1207 = vsel %vm644, %v1198, %v1200
    %v1208 = vsel %vm644, %v1196, %v1198
    %v1209 = vsel %vm644, %v1194, %v1196
    %v1210 = vsel %vm644, %v1204, %v1194
    %1211 = vrot.lane.b32.xlu0 %v848, 110
    %v1212 = vpop.permute.xlu0 %1211
    %1213 = vrot.lane.b32.xlu0 %v849, 110
    %v1214 = vpop.permute.xlu0 %1213
    %1215 = vrot.lane.b32.xlu0 %v850, 110
    %v1216 = vpop.permute.xlu0 %1215
    %1217 = vrot.lane.b32.xlu0 %v851, 110
    %v1218 = vpop.permute.xlu0 %1217
    %1219 = vrot.lane.b32.xlu0 %v852, 110
    %v1220 = vpop.permute.xlu0 %1219
    %1221 = vrot.lane.b32.xlu0 %v853, 110
    %v1222 = vpop.permute.xlu0 %1221
    %v1223 = vsel %vm663, %v1220, %v1222
    %v1224 = vsel %vm663, %v1218, %v1220
    %v1225 = vsel %vm663, %v1216, %v1218
    %v1226 = vsel %vm663, %v1214, %v1216
    %v1227 = vsel %vm663, %v1212, %v1214
    %v1228 = vsel %vm663, %v1222, %v1212
    %1229 = vrot.lane.b32.xlu0 %v848, 109
    %v1230 = vpop.permute.xlu0 %1229
    %1231 = vrot.lane.b32.xlu0 %v849, 109
    %v1232 = vpop.permute.xlu0 %1231
    %1233 = vrot.lane.b32.xlu0 %v850, 109
    %v1234 = vpop.permute.xlu0 %1233
    %1235 = vrot.lane.b32.xlu0 %v851, 109
    %v1236 = vpop.permute.xlu0 %1235
    %1237 = vrot.lane.b32.xlu0 %v852, 109
    %v1238 = vpop.permute.xlu0 %1237
    %1239 = vrot.lane.b32.xlu0 %v853, 109
    %v1240 = vpop.permute.xlu0 %1239
    %v1241 = vsel %vm682, %v1238, %v1240
    %v1242 = vsel %vm682, %v1236, %v1238
    %v1243 = vsel %vm682, %v1234, %v1236
    %v1244 = vsel %vm682, %v1232, %v1234
    %v1245 = vsel %vm682, %v1230, %v1232
    %v1246 = vsel %vm682, %v1240, %v1230
    %s1247 = scalar_lea.vmem [#allocation7], 16
    %v1248 = vld [vmem:[%s1247] sm:$0xff]
    %v1250 = vsel %vm385, %v1248, 0
    %1252 = vmatpush.msra.mxu0 0.0
    %1253 = vmatpush.msra.mxu0 0.0
    %1254 = vmatpush.msra.mxu0 0.0
    %1255 = vmatpush.msra.mxu0 0.0
    %1256 = vmatpush.msra.mxu0 0.0
    %1257 = vmatpush.msra.mxu0 0.0
    %1258 = vmatpush.msra.mxu0 0.0
    %1259 = vmatpush.msra.mxu0 0.0
    %1260 = vmatpush.msra.mxu0 0.0
    %1261 = vmatpush.msra.mxu0 0.0
    %1262 = vmatpush.msra.mxu0 0.0
    %1263 = vmatpush.msra.mxu0 0.0
    %1264 = vmatpush.msra.mxu0 0.0
    %1265 = vmatpush.msra.mxu0 %v1245
    %1266 = vmatpush.msra.mxu0 %v1227
    %1267 = vmatpush.msra.mxu0 %v1209
    %1268 = vmatmul.f32.gmra.mxu0 %v1250
    %v1269 = vpop.f32.mrf.mxu0
    %v1270 = vadd.f32 0.0, %v1269
    %1271 = vdwg.mxu0
    %1272 = vmatpush.msra.mxu0 0.0
    %1273 = vmatpush.msra.mxu0 0.0
    %1274 = vmatpush.msra.mxu0 0.0
    %1275 = vmatpush.msra.mxu0 0.0
    %1276 = vmatpush.msra.mxu0 0.0
    %1277 = vmatpush.msra.mxu0 0.0
    %1278 = vmatpush.msra.mxu0 0.0
    %1279 = vmatpush.msra.mxu0 0.0
    %1280 = vmatpush.msra.mxu0 0.0
    %1281 = vmatpush.msra.mxu0 0.0
    %1282 = vmatpush.msra.mxu0 0.0
    %1283 = vmatpush.msra.mxu0 0.0
    %1284 = vmatpush.msra.mxu0 0.0
    %1285 = vmatpush.msra.mxu0 %v1244
    %1286 = vmatpush.msra.mxu0 %v1226
    %1287 = vmatpush.msra.mxu0 %v1208
    %1288 = vmatmul.f32.gmra.mxu0 %v1250
    %v1289 = vpop.f32.mrf.mxu0
    %v1290 = vadd.f32 0.0, %v1289
    %1291 = vdwg.mxu0
    %1292 = vmatpush.msra.mxu0 0.0
    %1293 = vmatpush.msra.mxu0 0.0
    %1294 = vmatpush.msra.mxu0 0.0
    %1295 = vmatpush.msra.mxu0 0.0
    %1296 = vmatpush.msra.mxu0 0.0
    %1297 = vmatpush.msra.mxu0 0.0
    %1298 = vmatpush.msra.mxu0 0.0
    %1299 = vmatpush.msra.mxu0 0.0
    %1300 = vmatpush.msra.mxu0 0.0
    %1301 = vmatpush.msra.mxu0 0.0
    %1302 = vmatpush.msra.mxu0 0.0
    %1303 = vmatpush.msra.mxu0 0.0
    %1304 = vmatpush.msra.mxu0 0.0
    %1305 = vmatpush.msra.mxu0 %v1243
    %1306 = vmatpush.msra.mxu0 %v1225
    %1307 = vmatpush.msra.mxu0 %v1207
    %1308 = vmatmul.f32.gmra.mxu0 %v1250
    %v1309 = vpop.f32.mrf.mxu0
    %v1310 = vadd.f32 0.0, %v1309
    %1311 = vdwg.mxu0
    %1312 = vmatpush.msra.mxu0 0.0
    %1313 = vmatpush.msra.mxu0 0.0
    %1314 = vmatpush.msra.mxu0 0.0
    %1315 = vmatpush.msra.mxu0 0.0
    %1316 = vmatpush.msra.mxu0 0.0
    %1317 = vmatpush.msra.mxu0 0.0
    %1318 = vmatpush.msra.mxu0 0.0
    %1319 = vmatpush.msra.mxu0 0.0
    %1320 = vmatpush.msra.mxu0 0.0
    %1321 = vmatpush.msra.mxu0 0.0
    %1322 = vmatpush.msra.mxu0 0.0
    %1323 = vmatpush.msra.mxu0 0.0
    %1324 = vmatpush.msra.mxu0 0.0
    %1325 = vmatpush.msra.mxu0 %v1242
    %1326 = vmatpush.msra.mxu0 %v1224
    %1327 = vmatpush.msra.mxu0 %v1206
    %1328 = vmatmul.f32.gmra.mxu0 %v1250
    %v1329 = vpop.f32.mrf.mxu0
    %v1330 = vadd.f32 0.0, %v1329
    %1331 = vdwg.mxu0
    %1332 = vmatpush.msra.mxu0 0.0
    %1333 = vmatpush.msra.mxu0 0.0
    %1334 = vmatpush.msra.mxu0 0.0
    %1335 = vmatpush.msra.mxu0 0.0
    %1336 = vmatpush.msra.mxu0 0.0
    %1337 = vmatpush.msra.mxu0 0.0
    %1338 = vmatpush.msra.mxu0 0.0
    %1339 = vmatpush.msra.mxu0 0.0
    %1340 = vmatpush.msra.mxu0 0.0
    %1341 = vmatpush.msra.mxu0 0.0
    %1342 = vmatpush.msra.mxu0 0.0
    %1343 = vmatpush.msra.mxu0 0.0
    %1344 = vmatpush.msra.mxu0 0.0
    %1345 = vmatpush.msra.mxu0 %v1241
    %1346 = vmatpush.msra.mxu0 %v1223
    %1347 = vmatpush.msra.mxu0 %v1205
    %1348 = vmatmul.f32.gmra.mxu0 %v1250
    %v1349 = vpop.f32.mrf.mxu0
    %v1350 = vadd.f32 0.0, %v1349
    %1351 = vdwg.mxu0
    %1352 = vmatpush.msra.mxu0 0.0
    %1353 = vmatpush.msra.mxu0 0.0
    %1354 = vmatpush.msra.mxu0 0.0
    %1355 = vmatpush.msra.mxu0 0.0
    %1356 = vmatpush.msra.mxu0 0.0
    %1357 = vmatpush.msra.mxu0 0.0
    %1358 = vmatpush.msra.mxu0 0.0
    %1359 = vmatpush.msra.mxu0 0.0
    %1360 = vmatpush.msra.mxu0 0.0
    %1361 = vmatpush.msra.mxu0 0.0
    %1362 = vmatpush.msra.mxu0 0.0
    %1363 = vmatpush.msra.mxu0 0.0
    %1364 = vmatpush.msra.mxu0 0.0
    %1365 = vmatpush.msra.mxu0 %v1246
    %1366 = vmatpush.msra.mxu0 %v1228
    %1367 = vmatpush.msra.mxu0 %v1210
    %1368 = vmatmul.f32.gmra.mxu0 %v1250
    %v1369 = vpop.f32.mrf.mxu0
    %v1370 = vadd.f32 0.0, %v1369
    %1371 = vdwg.mxu0
    %v1372 = vadd.f32 %v1091, %v1270
    %v1373 = vadd.f32 %v1111, %v1290
    %v1374 = vadd.f32 %v1131, %v1310
    %v1375 = vadd.f32 %v1151, %v1330
    %v1376 = vadd.f32 %v1171, %v1350
    %v1377 = vadd.f32 %v1191, %v1370
    %v1378 = vld [vmem:[%s8] sm:$0xff]
    %1380 = vset.pattern.permute.xlu0 0
    %1381 = vperm.xlu0 %1380, %v1378
    %v1382 = vpop.permute.xlu0 %1381
    %v1384 = vadd.f32 %v1372, %v1382
    %v1385 = vadd.f32 %v1373, %v1382
    %v1386 = vadd.f32 %v1374, %v1382
    %v1387 = vadd.f32 %v1375, %v1382
    %v1388 = vadd.f32 %v1376, %v1382
    %v1389 = vadd.f32 %v1377, %v1382
    %v1390 = vadd.f32 %v1384, %v78
    %v1391 = vadd.f32 %v1385, %v79
    %v1392 = vadd.f32 %v1386, %v80
    %v1393 = vadd.f32 %v1387, %v81
    %v1394 = vadd.f32 %v1388, %v82
    %v1395 = vadd.f32 %v1389, %v83
    %1396 = vst [vmem:[#allocation8] sm:$0xff] %v1390
    %1397 = vst [vmem:[#allocation8 + $0x8] sm:$0xff] %v1391
    %1398 = vst [vmem:[#allocation8 + $0x10] sm:$0xff] %v1392
    %1399 = vst [vmem:[#allocation8 + $0x18] sm:$0xff] %v1393
    %1400 = vst [vmem:[#allocation8 + $0x20] sm:$0xff] %v1394
    %1401 = vst [vmem:[#allocation8 + $0x28] sm:$0xff] %v1395
    // Predicated region
    $region50: #{tpu_custom_call.1} parent=1 // pred_check
      _
    $region51: #{tpu_custom_call.1} parent=1 // pred_check_branch
      %1403 = sbr.rel (0) target = $region53
    $region52: #{tpu_custom_call.1} parent=1 // pred_region
      %1405 = vsyncadd [#allocation4], 0
      %s1407 = sshll.u32 [#allocation8], 4
      %s1408 = int_to_ptr.vmem [resolvable:$true] %s1407
      %s1409 = sshll.u32 %s9, 4
      %s1410 = int_to_ptr.hbm [resolvable:$true] %s1409
      %1412 = dma.vmem_to_hbm [thread:$0]  %s1408, 768, %s1410, [#allocation4]
    $region53: #{tpu_custom_call.1} parent=1 // pred_fallthru
      _
    // Predicated region
    $region54: #{tpu_custom_call.1} parent=1 // pred_check
      _
    $region55: #{tpu_custom_call.1} parent=1 // pred_check_branch
      %1414 = sbr.rel (0) target = $region57
    $region56: #{tpu_custom_call.1} parent=1 // pred_region
      %1416 = dma.done [#allocation4], 768
    $region57: #{tpu_custom_call.1} parent=1 // pred_fallthru
      _
    %1417 = vsyncpa [#allocation3], 1
    %1418 = vsyncpa [#allocation6], 1
    %1419 = vsyncpa [#allocation4], 1

</llo_original>
